<compile_context>
chip_gen: v7x
topology: tpu7x:2x2x1
jax: 0.10.0
libtpu: 0.0.40
codegen_flags: <defaults>
</compile_context>

<pallas_src>
import jax
import jax.numpy as jnp
from jax import lax
from jax.experimental import pallas as pl
from jax.experimental.pallas import tpu as pltpu


_SUB = 128            # rows per in-kernel sub-chunk (bounds vreg pressure)
_TARGET_TILE = 8192   # batch rows per grid step


def mlp_kernel(x_ref,
               w1_ref, b1_ref,
               w2_ref, b2_ref,
               w3_ref, b3_ref,
               w4_ref, b4_ref,
               o_ref):
    """Fused D->128->64->32->2 MLP on one (tm, D) batch tile.

    The tile is processed in _SUB-row sub-chunks inside a fori_loop so live
    intermediates stay a few vregs regardless of tile size.  Output is written
    transposed, (2, tm), so every store is lane-dense.
    """
    tm = x_ref.shape[0]
    n_sub = tm // _SUB   # wrapper guarantees tm % _SUB == 0

    def body(s, carry):
        r = pl.multiple_of(s * _SUB, _SUB)
        x = x_ref[pl.ds(r, _SUB), :]

        # Layer 1 in f32: K=28 leaves the MXU mostly idle, so f32 here is free
        # and tightens parity vs. the f32 reference.  (x may arrive as bf16 --
        # the recommended storage dtype to halve HBM traffic -- and is upcast
        # on the VPU.)
        h = jnp.dot(x.astype(jnp.float32), w1_ref[...],
                    preferred_element_type=jnp.float32) + b1_ref[...]
        h = jnp.maximum(h, 0.0)

        # Layers 2-4: bf16 matmul operands, f32 accumulation, f32 bias/ReLU.
        h = jnp.dot(h.astype(jnp.bfloat16), w2_ref[...],
                    preferred_element_type=jnp.float32) + b2_ref[...]
        h = jnp.maximum(h, 0.0)
        h = jnp.dot(h.astype(jnp.bfloat16), w3_ref[...],
                    preferred_element_type=jnp.float32) + b3_ref[...]
        h = jnp.maximum(h, 0.0)
        logits = jnp.dot(h.astype(jnp.bfloat16), w4_ref[...],
                         preferred_element_type=jnp.float32) + b4_ref[...]

        # Lane-dense transposed store: avoids _SUB/8 masked vst.msk partial
        # stores; the (SUB,2)->(2,SUB) shuffle uses the otherwise-idle XLU slot.
        o_ref[:, pl.ds(r, _SUB)] = logits.T.astype(o_ref.dtype)
        return carry

    lax.fori_loop(0, n_sub, body, 0, unroll=2)


def _round_up(x, m):
    return ((x + m - 1) // m) * m


def _choose_tile_m(B, target):
    """Batch rows per grid step (always a multiple of _SUB = 128).

    Large tiles amortize the ~0.35 us fixed per-grid-step overhead.  Keep >= 4
    grid steps only when tiles can stay >= 2048 rows, so v7x's two TensorCores
    (dimension_semantics="parallel") both get work; v5e/v6e lose almost nothing.
    """
    tm = max(_SUB, _round_up(target, _SUB))
    if B >= 4 * 2048:
        tm = min(tm, _round_up(pl.cdiv(B, 4), _SUB))
    tm = min(tm, (B // _SUB) * _SUB)   # never exceed the batch
    return max(tm, _SUB)


def higgs_classifier_forward(x, params, *, target_tile_m=_TARGET_TILE):
    """Fused 4-layer MLP forward as a single Pallas kernel.

    x:      (B, input_dim), float32 or bfloat16.  For large batches, store/pass
            x as bfloat16 to halve the dominant HBM stream (the kernel upcasts
            on the VPU).  Do NOT astype in this wrapper -- that would add an
            extra XLA pass over x.
    params: dict with w1 (D,128), b1 (1,128), w2 (128,64), b2 (1,64),
                      w3 (64,32), b3 (1,32),  w4 (32,2),  b4 (1,2)
    returns (B, 2) float32 logits (same math as the PyTorch module).
    """
    B, D = x.shape

    # Tiny-batch path only: pad up to one full 128-row tile (a few KB copy).
    # For B >= 128 we never pad -- pl.cdiv grid + Pallas ragged last block
    # (overhang reads don't-care, OOB writes dropped; rows are independent, so
    # garbage tail rows cannot contaminate real rows).
    if B < _SUB:
        x = jnp.pad(x, ((0, _SUB - B), (0, 0)))
        Bp = _SUB
    else:
        Bp = B

    tm = _choose_tile_m(Bp, target_tile_m)
    grid = (pl.cdiv(Bp, tm),)

    # Layer-1 weight stays f32; layers 2-4 are bf16 MXU operands; biases f32.
    w1 = params["w1"].astype(jnp.float32)
    w2 = params["w2"].astype(jnp.bfloat16)
    w3 = params["w3"].astype(jnp.bfloat16)
    w4 = params["w4"].astype(jnp.bfloat16)
    b1 = params["b1"].astype(jnp.float32)
    b2 = params["b2"].astype(jnp.float32)
    b3 = params["b3"].astype(jnp.float32)
    b4 = params["b4"].astype(jnp.float32)

    # Weights/biases (<35 KB total) stay VMEM-resident as full-array blocks.
    # (Packing them into one slab would only shave DMA-descriptor bookkeeping.)
    full = lambda a: pl.BlockSpec(a.shape, lambda i: (0, 0))

    flops = 2 * Bp * (D * 128 + 128 * 64 + 64 * 32 + 32 * 2)
    weight_bytes = sum(int(a.size) * a.dtype.itemsize
                       for a in (w1, b1, w2, b2, w3, b3, w4, b4))
    bytes_accessed = Bp * D * x.dtype.itemsize + Bp * 2 * 4 + weight_bytes
    cost = pl.CostEstimate(flops=flops, bytes_accessed=bytes_accessed,
                           transcendentals=0)

    out = pl.pallas_call(
        mlp_kernel,
        out_shape=jax.ShapeDtypeStruct((2, Bp), jnp.float32),
        grid=grid,
        in_specs=[
            pl.BlockSpec((tm, D), lambda i: (i, 0)),       # streaming x tile
            full(w1), full(b1),
            full(w2), full(b2),
            full(w3), full(b3),
            full(w4), full(b4),
        ],
        out_specs=pl.BlockSpec((2, tm), lambda i: (0, i)),  # transposed, lane-dense
        cost_estimate=cost,
        compiler_params=pltpu.CompilerParams(
            dimension_semantics=("parallel",),
        ),
    )(x, w1, b1, w2, b2, w3, b3, w4, b4)

    # (2, Bp) -> (B, 2): a tiny (8 B/row) XLA transpose of the logits only.
    return out[:, :B].T


def init_params(key, input_dim):
    """Matches nn.Linear shapes; weights stored transposed as (in, out)."""
    dims = [(input_dim, 128), (128, 64), (64, 32), (32, 2)]
    params = {}
    for idx, (fan_in, fan_out) in enumerate(dims, start=1):
        key, kw, kb = jax.random.split(key, 3)
        bound = 1.0 / jnp.sqrt(fan_in)   # PyTorch default uniform init
        params[f"w{idx}"] = jax.random.uniform(
            kw, (fan_in, fan_out), jnp.float32, -bound, bound)
        params[f"b{idx}"] = jax.random.uniform(
            kb, (1, fan_out), jnp.float32, -bound, bound)
    return params


def reference_forward(x, p):
    h = jnp.maximum(x @ p["w1"] + p["b1"], 0.0)
    h = jnp.maximum(h @ p["w2"] + p["b2"], 0.0)
    h = jnp.maximum(h @ p["w3"] + p["b3"], 0.0)
    return h @ p["w4"] + p["b4"]


if __name__ == "__main__":
    key = jax.random.PRNGKey(0)
    input_dim = 28   # HIGGS dataset feature count
    k_x, k_p = jax.random.split(key)
    params = init_params(k_p, input_dim)

    # Case 1: batch > one tile and not a multiple of it -> exercises the
    # no-padding ragged-last-block path (grid of 2, tm = 256).
    batch = 300
    x = jax.random.normal(k_x, (batch, input_dim), jnp.float32)
    logits = jax.block_until_ready(higgs_classifier_forward(x, params))
    ref = reference_forward(x, params)
    assert logits.shape == (batch, 2)
    assert jnp.allclose(logits, ref, atol=5e-2, rtol=5e-2)

    # Case 2: tiny batch (< 128 rows) -> cheap pad-to-one-tile path.
    x_small = x[:100]
    logits_small = jax.block_until_ready(higgs_classifier_forward(x_small, params))
    assert logits_small.shape == (100, 2)
    assert jnp.allclose(logits_small, reference_forward(x_small, params),
                        atol=5e-2, rtol=5e-2)

    print("KERNEL_OK")
</pallas_src>

<mosaic_0001>
module attributes {stable_mosaic.version = 11 : i64} {
  func.func @mlp_kernel(%arg0: i32, %arg1: memref<256x28xf32, #tpu.memory_space<vmem>>, %arg2: memref<28x128xf32, #tpu.memory_space<vmem>>, %arg3: memref<1x128xf32, #tpu.memory_space<vmem>>, %arg4: memref<128x64xbf16, #tpu.memory_space<vmem>>, %arg5: memref<1x64xf32, #tpu.memory_space<vmem>>, %arg6: memref<64x32xbf16, #tpu.memory_space<vmem>>, %arg7: memref<1x32xf32, #tpu.memory_space<vmem>>, %arg8: memref<32x2xbf16, #tpu.memory_space<vmem>>, %arg9: memref<1x2xf32, #tpu.memory_space<vmem>>, %arg10: memref<2x256xf32, #tpu.memory_space<vmem>>) attributes {dimension_semantics = [#tpu.dimension_semantics<parallel>], iteration_bounds = array<i64: 2>, scalar_prefetch = 0 : i64, scratch_operands = 0 : i64, tpu.core_type = #tpu.core_type<tc>, window_params = [{transform_indices = @transform_0, window_bounds = array<i64: 256, 28>}, {pipeline_mode = #tpu.pipeline_mode<synchronous>, transform_indices = @transform_1, window_bounds = array<i64: 28, 128>}, {pipeline_mode = #tpu.pipeline_mode<synchronous>, transform_indices = @transform_2, window_bounds = array<i64: 1, 128>}, {pipeline_mode = #tpu.pipeline_mode<synchronous>, transform_indices = @transform_3, window_bounds = array<i64: 128, 64>}, {pipeline_mode = #tpu.pipeline_mode<synchronous>, transform_indices = @transform_4, window_bounds = array<i64: 1, 64>}, {pipeline_mode = #tpu.pipeline_mode<synchronous>, transform_indices = @transform_5, window_bounds = array<i64: 64, 32>}, {pipeline_mode = #tpu.pipeline_mode<synchronous>, transform_indices = @transform_6, window_bounds = array<i64: 1, 32>}, {pipeline_mode = #tpu.pipeline_mode<synchronous>, transform_indices = @transform_7, window_bounds = array<i64: 32, 2>}, {pipeline_mode = #tpu.pipeline_mode<synchronous>, transform_indices = @transform_8, window_bounds = array<i64: 1, 2>}, {transform_indices = @transform_9, window_bounds = array<i64: 2, 256>}]} {
    %c0_i32 = arith.constant 0 : i32
    %c128_i32 = arith.constant 128 : i32
    %0 = arith.muli %c0_i32, %c128_i32 : i32
    %1 = tpu.assume_multiple %0, 128 : i32
    %2 = arith.index_cast %1 : i32 to index
    %c0 = arith.constant 0 : index
    %3 = vector.load %arg1[%2, %c0] : memref<256x28xf32, #tpu.memory_space<vmem>>, vector<128x28xf32>
    %c0_0 = arith.constant 0 : index
    %c0_1 = arith.constant 0 : index
    %4 = vector.load %arg2[%c0_0, %c0_1] : memref<28x128xf32, #tpu.memory_space<vmem>>, vector<28x128xf32>
    %cst = arith.constant dense<0.000000e+00> : vector<128x128xf32>
    %5 = tpu.matmul %3, %4, %cst {dimension_numbers = #tpu.dot_dimension_numbers<[1], [0], [0], [1], [0, 0, 1, 1], [], []>} : vector<128x28xf32>, vector<28x128xf32>, vector<128x128xf32> -> vector<128x128xf32>
    %c0_2 = arith.constant 0 : index
    %c0_3 = arith.constant 0 : index
    %6 = vector.load %arg3[%c0_2, %c0_3] : memref<1x128xf32, #tpu.memory_space<vmem>>, vector<1x128xf32>
    %7 = vector.broadcast %6 : vector<1x128xf32> to vector<128x128xf32>
    %8 = arith.addf %5, %7 : vector<128x128xf32>
    %cst_4 = arith.constant 0.000000e+00 : f32
    %9 = vector.broadcast %cst_4 : f32 to vector<128x128xf32>
    %10 = arith.maximumf %8, %9 : vector<128x128xf32>
    %11 = arith.truncf %10 : vector<128x128xf32> to vector<128x128xbf16>
    %c0_5 = arith.constant 0 : index
    %c0_6 = arith.constant 0 : index
    %12 = vector.load %arg4[%c0_5, %c0_6] : memref<128x64xbf16, #tpu.memory_space<vmem>>, vector<128x64xbf16>
    %cst_7 = arith.constant dense<0.000000e+00> : vector<128x64xf32>
    %13 = tpu.matmul %11, %12, %cst_7 {dimension_numbers = #tpu.dot_dimension_numbers<[1], [0], [0], [1], [0, 0, 1, 1], [], []>} : vector<128x128xbf16>, vector<128x64xbf16>, vector<128x64xf32> -> vector<128x64xf32>
    %c0_8 = arith.constant 0 : index
    %c0_9 = arith.constant 0 : index
    %14 = vector.load %arg5[%c0_8, %c0_9] : memref<1x64xf32, #tpu.memory_space<vmem>>, vector<1x64xf32>
    %15 = vector.broadcast %14 : vector<1x64xf32> to vector<128x64xf32>
    %16 = arith.addf %13, %15 : vector<128x64xf32>
    %cst_10 = arith.constant 0.000000e+00 : f32
    %17 = vector.broadcast %cst_10 : f32 to vector<128x64xf32>
    %18 = arith.maximumf %16, %17 : vector<128x64xf32>
    %19 = arith.truncf %18 : vector<128x64xf32> to vector<128x64xbf16>
    %c0_11 = arith.constant 0 : index
    %c0_12 = arith.constant 0 : index
    %20 = vector.load %arg6[%c0_11, %c0_12] : memref<64x32xbf16, #tpu.memory_space<vmem>>, vector<64x32xbf16>
    %cst_13 = arith.constant dense<0.000000e+00> : vector<128x32xf32>
    %21 = tpu.matmul %19, %20, %cst_13 {dimension_numbers = #tpu.dot_dimension_numbers<[1], [0], [0], [1], [0, 0, 1, 1], [], []>} : vector<128x64xbf16>, vector<64x32xbf16>, vector<128x32xf32> -> vector<128x32xf32>
    %c0_14 = arith.constant 0 : index
    %c0_15 = arith.constant 0 : index
    %22 = vector.load %arg7[%c0_14, %c0_15] : memref<1x32xf32, #tpu.memory_space<vmem>>, vector<1x32xf32>
    %23 = vector.broadcast %22 : vector<1x32xf32> to vector<128x32xf32>
    %24 = arith.addf %21, %23 : vector<128x32xf32>
    %cst_16 = arith.constant 0.000000e+00 : f32
    %25 = vector.broadcast %cst_16 : f32 to vector<128x32xf32>
    %26 = arith.maximumf %24, %25 : vector<128x32xf32>
    %27 = arith.truncf %26 : vector<128x32xf32> to vector<128x32xbf16>
    %c0_17 = arith.constant 0 : index
    %c0_18 = arith.constant 0 : index
    %28 = vector.load %arg8[%c0_17, %c0_18] : memref<32x2xbf16, #tpu.memory_space<vmem>>, vector<32x2xbf16>
    %cst_19 = arith.constant dense<0.000000e+00> : vector<128x2xf32>
    %29 = tpu.matmul %27, %28, %cst_19 {dimension_numbers = #tpu.dot_dimension_numbers<[1], [0], [0], [1], [0, 0, 1, 1], [], []>} : vector<128x32xbf16>, vector<32x2xbf16>, vector<128x2xf32> -> vector<128x2xf32>
    %c0_20 = arith.constant 0 : index
    %c0_21 = arith.constant 0 : index
    %30 = vector.load %arg9[%c0_20, %c0_21] : memref<1x2xf32, #tpu.memory_space<vmem>>, vector<1x2xf32>
    %31 = vector.broadcast %30 : vector<1x2xf32> to vector<128x2xf32>
    %32 = arith.addf %29, %31 : vector<128x2xf32>
    %33 = tpu.transpose %32, [1, 0] : vector<128x2xf32> -> vector<2x128xf32>
    %c0_22 = arith.constant 0 : index
    %34 = arith.index_cast %1 : i32 to index
    %35 = vector.load %arg10[%c0_22, %34] : memref<2x256xf32, #tpu.memory_space<vmem>>, vector<2x128xf32>
    tpu.vector_store %arg10[%c0_22, %34], %33 {strides = array<i32>} : memref<2x256xf32, #tpu.memory_space<vmem>>, vector<2x128xf32>,
    %c1_i32 = arith.constant 1 : i32
    %c128_i32_23 = arith.constant 128 : i32
    %36 = arith.muli %c1_i32, %c128_i32_23 : i32
    %37 = tpu.assume_multiple %36, 128 : i32
    %38 = arith.index_cast %37 : i32 to index
    %c0_24 = arith.constant 0 : index
    %39 = vector.load %arg1[%38, %c0_24] : memref<256x28xf32, #tpu.memory_space<vmem>>, vector<128x28xf32>
    %c0_25 = arith.constant 0 : index
    %c0_26 = arith.constant 0 : index
    %40 = vector.load %arg2[%c0_25, %c0_26] : memref<28x128xf32, #tpu.memory_space<vmem>>, vector<28x128xf32>
    %cst_27 = arith.constant dense<0.000000e+00> : vector<128x128xf32>
    %41 = tpu.matmul %39, %40, %cst_27 {dimension_numbers = #tpu.dot_dimension_numbers<[1], [0], [0], [1], [0, 0, 1, 1], [], []>} : vector<128x28xf32>, vector<28x128xf32>, vector<128x128xf32> -> vector<128x128xf32>
    %c0_28 = arith.constant 0 : index
    %c0_29 = arith.constant 0 : index
    %42 = vector.load %arg3[%c0_28, %c0_29] : memref<1x128xf32, #tpu.memory_space<vmem>>, vector<1x128xf32>
    %43 = vector.broadcast %42 : vector<1x128xf32> to vector<128x128xf32>
    %44 = arith.addf %41, %43 : vector<128x128xf32>
    %cst_30 = arith.constant 0.000000e+00 : f32
    %45 = vector.broadcast %cst_30 : f32 to vector<128x128xf32>
    %46 = arith.maximumf %44, %45 : vector<128x128xf32>
    %47 = arith.truncf %46 : vector<128x128xf32> to vector<128x128xbf16>
    %c0_31 = arith.constant 0 : index
    %c0_32 = arith.constant 0 : index
    %48 = vector.load %arg4[%c0_31, %c0_32] : memref<128x64xbf16, #tpu.memory_space<vmem>>, vector<128x64xbf16>
    %cst_33 = arith.constant dense<0.000000e+00> : vector<128x64xf32>
    %49 = tpu.matmul %47, %48, %cst_33 {dimension_numbers = #tpu.dot_dimension_numbers<[1], [0], [0], [1], [0, 0, 1, 1], [], []>} : vector<128x128xbf16>, vector<128x64xbf16>, vector<128x64xf32> -> vector<128x64xf32>
    %c0_34 = arith.constant 0 : index
    %c0_35 = arith.constant 0 : index
    %50 = vector.load %arg5[%c0_34, %c0_35] : memref<1x64xf32, #tpu.memory_space<vmem>>, vector<1x64xf32>
    %51 = vector.broadcast %50 : vector<1x64xf32> to vector<128x64xf32>
    %52 = arith.addf %49, %51 : vector<128x64xf32>
    %cst_36 = arith.constant 0.000000e+00 : f32
    %53 = vector.broadcast %cst_36 : f32 to vector<128x64xf32>
    %54 = arith.maximumf %52, %53 : vector<128x64xf32>
    %55 = arith.truncf %54 : vector<128x64xf32> to vector<128x64xbf16>
    %c0_37 = arith.constant 0 : index
    %c0_38 = arith.constant 0 : index
    %56 = vector.load %arg6[%c0_37, %c0_38] : memref<64x32xbf16, #tpu.memory_space<vmem>>, vector<64x32xbf16>
    %cst_39 = arith.constant dense<0.000000e+00> : vector<128x32xf32>
    %57 = tpu.matmul %55, %56, %cst_39 {dimension_numbers = #tpu.dot_dimension_numbers<[1], [0], [0], [1], [0, 0, 1, 1], [], []>} : vector<128x64xbf16>, vector<64x32xbf16>, vector<128x32xf32> -> vector<128x32xf32>
    %c0_40 = arith.constant 0 : index
    %c0_41 = arith.constant 0 : index
    %58 = vector.load %arg7[%c0_40, %c0_41] : memref<1x32xf32, #tpu.memory_space<vmem>>, vector<1x32xf32>
    %59 = vector.broadcast %58 : vector<1x32xf32> to vector<128x32xf32>
    %60 = arith.addf %57, %59 : vector<128x32xf32>
    %cst_42 = arith.constant 0.000000e+00 : f32
    %61 = vector.broadcast %cst_42 : f32 to vector<128x32xf32>
    %62 = arith.maximumf %60, %61 : vector<128x32xf32>
    %63 = arith.truncf %62 : vector<128x32xf32> to vector<128x32xbf16>
    %c0_43 = arith.constant 0 : index
    %c0_44 = arith.constant 0 : index
    %64 = vector.load %arg8[%c0_43, %c0_44] : memref<32x2xbf16, #tpu.memory_space<vmem>>, vector<32x2xbf16>
    %cst_45 = arith.constant dense<0.000000e+00> : vector<128x2xf32>
    %65 = tpu.matmul %63, %64, %cst_45 {dimension_numbers = #tpu.dot_dimension_numbers<[1], [0], [0], [1], [0, 0, 1, 1], [], []>} : vector<128x32xbf16>, vector<32x2xbf16>, vector<128x2xf32> -> vector<128x2xf32>
    %c0_46 = arith.constant 0 : index
    %c0_47 = arith.constant 0 : index
    %66 = vector.load %arg9[%c0_46, %c0_47] : memref<1x2xf32, #tpu.memory_space<vmem>>, vector<1x2xf32>
    %67 = vector.broadcast %66 : vector<1x2xf32> to vector<128x2xf32>
    %68 = arith.addf %65, %67 : vector<128x2xf32>
    %69 = tpu.transpose %68, [1, 0] : vector<128x2xf32> -> vector<2x128xf32>
    %c0_48 = arith.constant 0 : index
    %70 = arith.index_cast %37 : i32 to index
    %71 = vector.load %arg10[%c0_48, %70] : memref<2x256xf32, #tpu.memory_space<vmem>>, vector<2x128xf32>
    tpu.vector_store %arg10[%c0_48, %70], %69 {strides = array<i32>} : memref<2x256xf32, #tpu.memory_space<vmem>>, vector<2x128xf32>,
    %c2_i32 = arith.constant 2 : i32
    return
  }
  func.func @transform_0(%arg0: i32) -> (i32, i32) {
    %c0_i32 = arith.constant 0 : i32
    %c0_i32_0 = arith.constant 0 : i32
    return %arg0, %c0_i32 : i32, i32
  }
  func.func @transform_1(%arg0: i32) -> (i32, i32) {
    %c0_i32 = arith.constant 0 : i32
    %c0_i32_0 = arith.constant 0 : i32
    %c0_i32_1 = arith.constant 0 : i32
    return %c0_i32, %c0_i32_0 : i32, i32
  }
  func.func @transform_2(%arg0: i32) -> (i32, i32) {
    %c0_i32 = arith.constant 0 : i32
    %c0_i32_0 = arith.constant 0 : i32
    %c0_i32_1 = arith.constant 0 : i32
    return %c0_i32, %c0_i32_0 : i32, i32
  }
  func.func @transform_3(%arg0: i32) -> (i32, i32) {
    %c0_i32 = arith.constant 0 : i32
    %c0_i32_0 = arith.constant 0 : i32
    %c0_i32_1 = arith.constant 0 : i32
    return %c0_i32, %c0_i32_0 : i32, i32
  }
  func.func @transform_4(%arg0: i32) -> (i32, i32) {
    %c0_i32 = arith.constant 0 : i32
    %c0_i32_0 = arith.constant 0 : i32
    %c0_i32_1 = arith.constant 0 : i32
    return %c0_i32, %c0_i32_0 : i32, i32
  }
  func.func @transform_5(%arg0: i32) -> (i32, i32) {
    %c0_i32 = arith.constant 0 : i32
    %c0_i32_0 = arith.constant 0 : i32
    %c0_i32_1 = arith.constant 0 : i32
    return %c0_i32, %c0_i32_0 : i32, i32
  }
  func.func @transform_6(%arg0: i32) -> (i32, i32) {
    %c0_i32 = arith.constant 0 : i32
    %c0_i32_0 = arith.constant 0 : i32
    %c0_i32_1 = arith.constant 0 : i32
    return %c0_i32, %c0_i32_0 : i32, i32
  }
  func.func @transform_7(%arg0: i32) -> (i32, i32) {
    %c0_i32 = arith.constant 0 : i32
    %c0_i32_0 = arith.constant 0 : i32
    %c0_i32_1 = arith.constant 0 : i32
    return %c0_i32, %c0_i32_0 : i32, i32
  }
  func.func @transform_8(%arg0: i32) -> (i32, i32) {
    %c0_i32 = arith.constant 0 : i32
    %c0_i32_0 = arith.constant 0 : i32
    %c0_i32_1 = arith.constant 0 : i32
    return %c0_i32, %c0_i32_0 : i32, i32
  }
  func.func @transform_9(%arg0: i32) -> (i32, i32) {
    %c0_i32 = arith.constant 0 : i32
    %c0_i32_0 = arith.constant 0 : i32
    return %c0_i32, %arg0 : i32, i32
  }
}

</mosaic_0001>

<llo_original>
// kernel: tpu_custom_call.1
$region0: #{tpu_custom_call.1}
  #allocation0 [shape = 'u32[]', space=smem, size = 0x4, offset = 0x4, fixed_abs, tag = 'smem constant byte address 0x4 - core index']
  #allocation1 [shape = 'u32[144,128]{1,0:T(1,128)}', space=vmem, size = 0x12000, scoped, tag = 'internal scratch']
  %s0 = inlined_call_operand.vmem [shape: f32[300,28], index: 0, kind: input, shape index: {}]
  %s1 = inlined_call_operand.vmem [shape: f32[28,128], index: 1, kind: input, shape index: {}]
  %s2 = inlined_call_operand.vmem [shape: f32[1,128], index: 2, kind: input, shape index: {}]
  %s3 = inlined_call_operand.vmem [shape: bf16[128,64], index: 3, kind: input, shape index: {}]
  %s4 = inlined_call_operand.vmem [shape: f32[1,64], index: 4, kind: input, shape index: {}]
  %s5 = inlined_call_operand.vmem [shape: bf16[64,32], index: 5, kind: input, shape index: {}]
  %s6 = inlined_call_operand.vmem [shape: f32[1,32], index: 6, kind: input, shape index: {}]
  %s7 = inlined_call_operand.vmem [shape: bf16[32,2], index: 7, kind: input, shape index: {}]
  %s8 = inlined_call_operand.vmem [shape: f32[1,2], index: 8, kind: input, shape index: {}]
  %s9 = inlined_call_operand.hbm [shape: f32[2,300], index: 9, kind: output, shape index: {}]
  %s10 = sld [smem:[#allocation0]]
  $region69: #{tpu_custom_call.1} parent=0
    _
  %s12 = ssub.s32 1, %s10
  %s13 = scalar_select 0, %s12, %s10
  $region1: #{tpu_custom_call.1} parent=0
    #allocation2 [shape = 'u8[4096]{0}', space=vmem, size = 0x1000, scoped, tag = 'output window, operand 0']
    #allocation3 [shape = 's32[2]{0}', space=sflag, size = 0x8, scoped, tag = 'scoped memory for tpu_custom_call.1']
    %14 = vsyncpa [#allocation3], 0
    %s15 = scalar_lea.sflag [#allocation3], 1
    %16 = vsyncpa %s15, 0
    loop: start=0, step=1, limit=4
    $region2: #{tpu_custom_call.1} parent=1 // loop_pre_header
      _
    $region3: #{tpu_custom_call.1} parent=1 // loop_header
      %s18 = sphi 0, %s22
      %p19 = scmp.ge.s32.totalorder %s18, 4
      %s28 = sphi 0, %s30
      %s31 = sphi 0, %s28
      %s32 = sphi 0, %s31
      %s48 = sphi 0, %s32
      %s52 = sphi 0, %s52
      %s54 = sphi 0, %s52
      %s55 = sphi 0, %s54
      %s69 = sphi 0, %s55
      %s73 = sphi 0, %s73
      %s75 = sphi 0, %s73
      %s76 = sphi 0, %s75
      %s90 = sphi 0, %s76
      %s94 = sphi 0, %s94
      %s96 = sphi 0, %s94
      %s97 = sphi 0, %s96
      %s111 = sphi 0, %s97
      %s115 = sphi 0, %s115
      %s117 = sphi 0, %s115
      %s118 = sphi 0, %s117
      %s132 = sphi 0, %s118
      %s136 = sphi 0, %s136
      %s138 = sphi 0, %s136
      %s139 = sphi 0, %s138
      %s153 = sphi 0, %s139
      %s157 = sphi 0, %s157
      %s159 = sphi 0, %s157
      %s160 = sphi 0, %s159
      %s174 = sphi 0, %s160
      %s178 = sphi 0, %s178
      %s180 = sphi 0, %s178
      %s181 = sphi 0, %s180
      %s195 = sphi 0, %s181
      %s199 = sphi 0, %s199
      %s201 = sphi 0, %s199
      %s202 = sphi 0, %s201
      %s216 = sphi 0, %s202
      %s222 = sphi 0, %s224
      %s225 = sphi 0, %s222
      %s226 = sphi 0, %s225
      %s242 = sphi 0, %s226
    $region4: #{tpu_custom_call.1} parent=1 // loop_header_branch
      %21 = sbr.rel (%p19) target = $region8
    $region5: #{tpu_custom_call.1} parent=1 // loop_body
      %s23 = ssub.s32 %s18, 1
      %s24 = ssub.s32 %s18, 2
      %s25 = sadd.s32 %s18, 1
      %s26 = ssub.s32 %s18, %s25
      %p27 = scmp.eq.s32.totalorder %s26, 0
      %s29 = sadd.s32 %s28, 1
      %s30 = scalar_select %p27, %s28, %s29
      %p33 = pneg %p27
      %p34 = scmp.eq.s32.totalorder %s18, 1
      %p35 = por %p33, %p34
      %p36 = scmp.ne.s32.totalorder %s28, %s31
      %p37 = scmp.eq.s32.totalorder %s18, 0
      %p38 = por %p36, %p37
      %p39 = scmp.ne.s32.totalorder %s28, %s31
      %p40 = scmp.eq.s32.totalorder %s23, 1
      %p41 = por %p39, %p40
      %p42 = scmp.ne.s32.totalorder %s31, %s32
      %p43 = scmp.eq.s32.totalorder %s23, 0
      %p44 = por %p42, %p43
      %p45 = scmp.ne.s32.totalorder %s31, %s32
      %p46 = scmp.eq.s32.totalorder %s24, 1
      %p47 = por %p45, %p46
      %p49 = scmp.ne.s32.totalorder %s32, %s48
      %p50 = scmp.eq.s32.totalorder %s24, 0
      %p51 = por %p49, %p50
      %s53 = sadd.s32 %s52, 1
      %p56 = scmp.eq.s32.totalorder %s18, 1
      %p57 = scmp.ne.s32.totalorder %s52, %s54
      %p58 = scmp.eq.s32.totalorder %s18, 0
      %p59 = por %p57, %p58
      %p60 = scmp.ne.s32.totalorder %s52, %s54
      %p61 = scmp.eq.s32.totalorder %s23, 1
      %p62 = por %p60, %p61
      %p63 = scmp.ne.s32.totalorder %s54, %s55
      %p64 = scmp.eq.s32.totalorder %s23, 0
      %p65 = por %p63, %p64
      %p66 = scmp.ne.s32.totalorder %s54, %s55
      %p67 = scmp.eq.s32.totalorder %s24, 1
      %p68 = por %p66, %p67
      %p70 = scmp.ne.s32.totalorder %s55, %s69
      %p71 = scmp.eq.s32.totalorder %s24, 0
      %p72 = por %p70, %p71
      %s74 = sadd.s32 %s73, 1
      %p77 = scmp.eq.s32.totalorder %s18, 1
      %p78 = scmp.ne.s32.totalorder %s73, %s75
      %p79 = scmp.eq.s32.totalorder %s18, 0
      %p80 = por %p78, %p79
      %p81 = scmp.ne.s32.totalorder %s73, %s75
      %p82 = scmp.eq.s32.totalorder %s23, 1
      %p83 = por %p81, %p82
      %p84 = scmp.ne.s32.totalorder %s75, %s76
      %p85 = scmp.eq.s32.totalorder %s23, 0
      %p86 = por %p84, %p85
      %p87 = scmp.ne.s32.totalorder %s75, %s76
      %p88 = scmp.eq.s32.totalorder %s24, 1
      %p89 = por %p87, %p88
      %p91 = scmp.ne.s32.totalorder %s76, %s90
      %p92 = scmp.eq.s32.totalorder %s24, 0
      %p93 = por %p91, %p92
      %s95 = sadd.s32 %s94, 1
      %p98 = scmp.eq.s32.totalorder %s18, 1
      %p99 = scmp.ne.s32.totalorder %s94, %s96
      %p100 = scmp.eq.s32.totalorder %s18, 0
      %p101 = por %p99, %p100
      %p102 = scmp.ne.s32.totalorder %s94, %s96
      %p103 = scmp.eq.s32.totalorder %s23, 1
      %p104 = por %p102, %p103
      %p105 = scmp.ne.s32.totalorder %s96, %s97
      %p106 = scmp.eq.s32.totalorder %s23, 0
      %p107 = por %p105, %p106
      %p108 = scmp.ne.s32.totalorder %s96, %s97
      %p109 = scmp.eq.s32.totalorder %s24, 1
      %p110 = por %p108, %p109
      %p112 = scmp.ne.s32.totalorder %s97, %s111
      %p113 = scmp.eq.s32.totalorder %s24, 0
      %p114 = por %p112, %p113
      %s116 = sadd.s32 %s115, 1
      %p119 = scmp.eq.s32.totalorder %s18, 1
      %p120 = scmp.ne.s32.totalorder %s115, %s117
      %p121 = scmp.eq.s32.totalorder %s18, 0
      %p122 = por %p120, %p121
      %p123 = scmp.ne.s32.totalorder %s115, %s117
      %p124 = scmp.eq.s32.totalorder %s23, 1
      %p125 = por %p123, %p124
      %p126 = scmp.ne.s32.totalorder %s117, %s118
      %p127 = scmp.eq.s32.totalorder %s23, 0
      %p128 = por %p126, %p127
      %p129 = scmp.ne.s32.totalorder %s117, %s118
      %p130 = scmp.eq.s32.totalorder %s24, 1
      %p131 = por %p129, %p130
      %p133 = scmp.ne.s32.totalorder %s118, %s132
      %p134 = scmp.eq.s32.totalorder %s24, 0
      %p135 = por %p133, %p134
      %s137 = sadd.s32 %s136, 1
      %p140 = scmp.eq.s32.totalorder %s18, 1
      %p141 = scmp.ne.s32.totalorder %s136, %s138
      %p142 = scmp.eq.s32.totalorder %s18, 0
      %p143 = por %p141, %p142
      %p144 = scmp.ne.s32.totalorder %s136, %s138
      %p145 = scmp.eq.s32.totalorder %s23, 1
      %p146 = por %p144, %p145
      %p147 = scmp.ne.s32.totalorder %s138, %s139
      %p148 = scmp.eq.s32.totalorder %s23, 0
      %p149 = por %p147, %p148
      %p150 = scmp.ne.s32.totalorder %s138, %s139
      %p151 = scmp.eq.s32.totalorder %s24, 1
      %p152 = por %p150, %p151
      %p154 = scmp.ne.s32.totalorder %s139, %s153
      %p155 = scmp.eq.s32.totalorder %s24, 0
      %p156 = por %p154, %p155
      %s158 = sadd.s32 %s157, 1
      %p161 = scmp.eq.s32.totalorder %s18, 1
      %p162 = scmp.ne.s32.totalorder %s157, %s159
      %p163 = scmp.eq.s32.totalorder %s18, 0
      %p164 = por %p162, %p163
      %p165 = scmp.ne.s32.totalorder %s157, %s159
      %p166 = scmp.eq.s32.totalorder %s23, 1
      %p167 = por %p165, %p166
      %p168 = scmp.ne.s32.totalorder %s159, %s160
      %p169 = scmp.eq.s32.totalorder %s23, 0
      %p170 = por %p168, %p169
      %p171 = scmp.ne.s32.totalorder %s159, %s160
      %p172 = scmp.eq.s32.totalorder %s24, 1
      %p173 = por %p171, %p172
      %p175 = scmp.ne.s32.totalorder %s160, %s174
      %p176 = scmp.eq.s32.totalorder %s24, 0
      %p177 = por %p175, %p176
      %s179 = sadd.s32 %s178, 1
      %p182 = scmp.eq.s32.totalorder %s18, 1
      %p183 = scmp.ne.s32.totalorder %s178, %s180
      %p184 = scmp.eq.s32.totalorder %s18, 0
      %p185 = por %p183, %p184
      %p186 = scmp.ne.s32.totalorder %s178, %s180
      %p187 = scmp.eq.s32.totalorder %s23, 1
      %p188 = por %p186, %p187
      %p189 = scmp.ne.s32.totalorder %s180, %s181
      %p190 = scmp.eq.s32.totalorder %s23, 0
      %p191 = por %p189, %p190
      %p192 = scmp.ne.s32.totalorder %s180, %s181
      %p193 = scmp.eq.s32.totalorder %s24, 1
      %p194 = por %p192, %p193
      %p196 = scmp.ne.s32.totalorder %s181, %s195
      %p197 = scmp.eq.s32.totalorder %s24, 0
      %p198 = por %p196, %p197
      %s200 = sadd.s32 %s199, 1
      %p203 = scmp.eq.s32.totalorder %s18, 1
      %p204 = scmp.ne.s32.totalorder %s199, %s201
      %p205 = scmp.eq.s32.totalorder %s18, 0
      %p206 = por %p204, %p205
      %p207 = scmp.ne.s32.totalorder %s199, %s201
      %p208 = scmp.eq.s32.totalorder %s23, 1
      %p209 = por %p207, %p208
      %p210 = scmp.ne.s32.totalorder %s201, %s202
      %p211 = scmp.eq.s32.totalorder %s23, 0
      %p212 = por %p210, %p211
      %p213 = scmp.ne.s32.totalorder %s201, %s202
      %p214 = scmp.eq.s32.totalorder %s24, 1
      %p215 = por %p213, %p214
      %p217 = scmp.ne.s32.totalorder %s202, %s216
      %p218 = scmp.eq.s32.totalorder %s24, 0
      %p219 = por %p217, %p218
      %s220 = ssub.s32 %s18, %s25
      %p221 = scmp.eq.s32.totalorder %s220, 0
      %s223 = sadd.s32 %s222, 1
      %s224 = scalar_select %p221, %s222, %s223
      %p227 = pneg %p221
      %p228 = scmp.eq.s32.totalorder %s18, 1
      %p229 = por %p227, %p228
      %p230 = scmp.ne.s32.totalorder %s222, %s225
      %p231 = scmp.eq.s32.totalorder %s18, 0
      %p232 = por %p230, %p231
      %p233 = scmp.ne.s32.totalorder %s222, %s225
      %p234 = scmp.eq.s32.totalorder %s23, 1
      %p235 = por %p233, %p234
      %p236 = scmp.ne.s32.totalorder %s225, %s226
      %p237 = scmp.eq.s32.totalorder %s23, 0
      %p238 = por %p236, %p237
      %p239 = scmp.ne.s32.totalorder %s225, %s226
      %p240 = scmp.eq.s32.totalorder %s24, 1
      %p241 = por %p239, %p240
      %p243 = scmp.ne.s32.totalorder %s226, %s242
      %p244 = scmp.eq.s32.totalorder %s24, 0
      %p245 = por %p243, %p244
      %p246 = scmp.le.s32.totalorder 1, %s18
      %p247 = scmp.lt.s32.totalorder %s18, 3
      %p248 = pnand %p246, %p247
      %p249 = pneg %p248
      // Predicated region
      $region9: #{tpu_custom_call.1} parent=5 // pred_check
        _
      $region10: #{tpu_custom_call.1} parent=5 // pred_check_branch
        %251 = sbr.rel (%p248) target = $region12
      $region11: #{tpu_custom_call.1} parent=5 // pred_region
        %s252 = ssub.s32 %s18, 1
        // Predicated region
        $region13: #{tpu_custom_call.1} parent=11 // pred_check
          %p253 = pneg %p65
        $region14: #{tpu_custom_call.1} parent=11 // pred_check_branch
          %255 = sbr.rel (%p253) target = $region16
        $region15: #{tpu_custom_call.1} parent=11 // pred_region
          _
        $region16: #{tpu_custom_call.1} parent=11 // pred_fallthru
          _
        // Predicated region
        $region17: #{tpu_custom_call.1} parent=11 // pred_check
          %p256 = pneg %p86
        $region18: #{tpu_custom_call.1} parent=11 // pred_check_branch
          %258 = sbr.rel (%p256) target = $region20
        $region19: #{tpu_custom_call.1} parent=11 // pred_region
          _
        $region20: #{tpu_custom_call.1} parent=11 // pred_fallthru
          _
        // Predicated region
        $region21: #{tpu_custom_call.1} parent=11 // pred_check
          %p259 = pneg %p107
        $region22: #{tpu_custom_call.1} parent=11 // pred_check_branch
          %261 = sbr.rel (%p259) target = $region24
        $region23: #{tpu_custom_call.1} parent=11 // pred_region
          _
        $region24: #{tpu_custom_call.1} parent=11 // pred_fallthru
          _
        // Predicated region
        $region25: #{tpu_custom_call.1} parent=11 // pred_check
          %p262 = pneg %p128
        $region26: #{tpu_custom_call.1} parent=11 // pred_check_branch
          %264 = sbr.rel (%p262) target = $region28
        $region27: #{tpu_custom_call.1} parent=11 // pred_region
          _
        $region28: #{tpu_custom_call.1} parent=11 // pred_fallthru
          _
        // Predicated region
        $region29: #{tpu_custom_call.1} parent=11 // pred_check
          %p265 = pneg %p149
        $region30: #{tpu_custom_call.1} parent=11 // pred_check_branch
          %267 = sbr.rel (%p265) target = $region32
        $region31: #{tpu_custom_call.1} parent=11 // pred_region
          _
        $region32: #{tpu_custom_call.1} parent=11 // pred_fallthru
          _
        // Predicated region
        $region33: #{tpu_custom_call.1} parent=11 // pred_check
          %p268 = pneg %p170
        $region34: #{tpu_custom_call.1} parent=11 // pred_check_branch
          %270 = sbr.rel (%p268) target = $region36
        $region35: #{tpu_custom_call.1} parent=11 // pred_region
          _
        $region36: #{tpu_custom_call.1} parent=11 // pred_fallthru
          _
        // Predicated region
        $region37: #{tpu_custom_call.1} parent=11 // pred_check
          %p271 = pneg %p191
        $region38: #{tpu_custom_call.1} parent=11 // pred_check_branch
          %273 = sbr.rel (%p271) target = $region40
        $region39: #{tpu_custom_call.1} parent=11 // pred_region
          _
        $region40: #{tpu_custom_call.1} parent=11 // pred_fallthru
          _
        // Predicated region
        $region41: #{tpu_custom_call.1} parent=11 // pred_check
          %p274 = pneg %p212
        $region42: #{tpu_custom_call.1} parent=11 // pred_check_branch
          %276 = sbr.rel (%p274) target = $region44
        $region43: #{tpu_custom_call.1} parent=11 // pred_region
          _
        $region44: #{tpu_custom_call.1} parent=11 // pred_fallthru
          _
      $region12: #{tpu_custom_call.1} parent=5 // pred_fallthru
        _
      %p277 = scmp.lt.s32.totalorder %s18, 2
      // Predicated region
      $region45: #{tpu_custom_call.1} parent=5 // pred_check
        %p278 = pneg %p277
      $region46: #{tpu_custom_call.1} parent=5 // pred_check_branch
        %280 = sbr.rel (%p278) target = $region48
      $region47: #{tpu_custom_call.1} parent=5 // pred_region
        // Predicated region
        $region49: #{tpu_custom_call.1} parent=47 // pred_check
          %p281 = pneg %p38
        $region50: #{tpu_custom_call.1} parent=47 // pred_check_branch
          %283 = sbr.rel (%p281) target = $region52
        $region51: #{tpu_custom_call.1} parent=47 // pred_region
          %s284 = smul.u32 32, %s18
          %s285 = ssub.s32 38, %s284
          %p286 = scmp.lt.s32.totalorder %s285, 32
          %s287 = scalar_select %p286, %s285, 32
          %s288 = smul.u32 128, %s287
          %p289 = scmp.lt.s32.totalorder %s284, 37
          %s290 = scalar_select %p289, %s284, 37
          %s291 = smul.addr %s290, 8
          %s292 = scalar_lea.vmem %s0, %s291
          %s293 = smul.u32 32, %s18
          %s294 = ssub.s32 38, %s293
          %p295 = scmp.lt.s32.totalorder %s294, 32
          %s296 = scalar_select %p295, %s294, 32
          %s297 = smul.u32 128, %s296
        $region52: #{tpu_custom_call.1} parent=47 // pred_fallthru
          _
      $region48: #{tpu_custom_call.1} parent=5 // pred_fallthru
        _
      %p298 = scmp.le.s32.totalorder 1, %s18
      %p299 = scmp.lt.s32.totalorder %s18, 3
      %p300 = pnand %p298, %p299
      %p301 = pneg %p300
      // Predicated region
      $region53: #{tpu_custom_call.1} parent=5 // pred_check
        _
      $region54: #{tpu_custom_call.1} parent=5 // pred_check_branch
        %303 = sbr.rel (%p300) target = $region56
      $region55: #{tpu_custom_call.1} parent=5 // pred_region
        %s304 = ssub.s32 %s18, 1
        %s305 = smul.u32 32, %s23
        %s306 = ssub.s32 38, %s305
        %p307 = scmp.lt.s32.totalorder %s306, 32
        %s308 = scalar_select %p307, %s306, 32
        %s309 = smul.u32 128, %s308
        %p310 = scmp.lt.s32.totalorder %s305, 37
        %s311 = scalar_select %p310, %s305, 37
        %s312 = smul.addr %s311, 8
        %s313 = scalar_lea.vmem %s0, %s312
        %p314 = pneg %p44
        %p315 = pneg %p41
        %p316 = pneg %p65
        %p317 = pneg %p62
        %p318 = pneg %p86
        %p319 = pneg %p83
        %p320 = pneg %p107
        %p321 = pneg %p104
        %p322 = pneg %p128
        %p323 = pneg %p125
        %p324 = pneg %p149
        %p325 = pneg %p146
        %p326 = pneg %p170
        %p327 = pneg %p167
        %p328 = pneg %p191
        %p329 = pneg %p188
        %p330 = pneg %p212
        %p331 = pneg %p209
        %p332 = pneg %p238
        %p333 = pneg %p235
        %s334 = sand.u32 %s225, 1
        %s335 = scalar_lea.sflag [#allocation3], %s334
        %s336 = sand.u32 %s225, 1
        %s337 = smul.addr %s336, 4
        %s338 = scalar_lea.vmem [#allocation2], %s337
        %s339 = smul.u32 32, %s23
        %s340 = ssub.s32 38, %s339
        %p341 = scmp.lt.s32.totalorder %s340, 32
        %s342 = scalar_select %p341, %s340, 32
        %s343 = smul.u32 128, %s342
        %p344 = scmp.lt.s32.totalorder %s339, 37
        %s345 = scalar_select %p344, %s339, 37
        %s346 = smul.addr %s345, 8
        %s347 = scalar_lea.vmem %s0, %s346
        %s348 = smul.u32 32, %s23
        %s349 = ssub.s32 38, %s348
        %p350 = scmp.lt.s32.totalorder %s349, 32
        %s351 = scalar_select %p350, %s349, 32
        %s352 = smul.u32 128, %s351
        %s353 = smul.u32 2, %s23
        %s354 = ssub.s32 3, %s353
        %p355 = scmp.lt.s32.totalorder %s354, 2
        %s356 = scalar_select %p355, %s354, 2
        %s357 = smul.u32 32, %s356
        %v359 = vld [vmem:[%s347] sm:$0xff]
        %v360 = vld [vmem:[%s347 + $0x8] sm:$0xff]
        %v361 = vld [vmem:[%s347 + $0x10] sm:$0xff]
        %v362 = vld [vmem:[%s347 + $0x18] sm:$0xff]
        %v363 = vld [vmem:[%s347 + $0x20] sm:$0xff]
        %v364 = vld [vmem:[%s347 + $0x28] sm:$0xff]
        %v365 = vld [vmem:[%s347 + $0x30] sm:$0xff]
        %v366 = vld [vmem:[%s347 + $0x38] sm:$0xff]
        %v367 = vld [vmem:[%s347 + $0x40] sm:$0xff]
        %v368 = vld [vmem:[%s347 + $0x48] sm:$0xff]
        %v369 = vld [vmem:[%s347 + $0x50] sm:$0xff]
        %v370 = vld [vmem:[%s347 + $0x58] sm:$0xff]
        %v371 = vld [vmem:[%s347 + $0x60] sm:$0xff]
        %v372 = vld [vmem:[%s347 + $0x68] sm:$0xff]
        %v373 = vld [vmem:[%s347 + $0x70] sm:$0xff]
        %v374 = vld [vmem:[%s347 + $0x78] sm:$0xff]
        %v375 = vld [vmem:[%s1] sm:$0xff]
        %v376 = vld [vmem:[%s1 + $0x8] sm:$0xff]
        %v377 = vld [vmem:[%s1 + $0x10] sm:$0xff]
        %v378 = vld [vmem:[%s1 + $0x18] sm:$0xf]
        %v379 = vld [vmem:[%s2] sm:$0x1]
        %v381 = vlaneseq
        %v382 = vshrl.u32 %v381, 7
        %v383 = vsub.s32 0, %v382
        %v384 = vrot.slane %v379, %v383
        %vm386 = vcmask 228352
        %v388 = vsel %vm386, %v359, 0
        %v391 = vsel %vm386, %v360, 0
        %v394 = vsel %vm386, %v361, 0
        %v397 = vsel %vm386, %v362, 0
        %v400 = vsel %vm386, %v363, 0
        %v403 = vsel %vm386, %v364, 0
        %v406 = vsel %vm386, %v365, 0
        %v409 = vsel %vm386, %v366, 0
        %v412 = vsel %vm386, %v367, 0
        %v415 = vsel %vm386, %v368, 0
        %v418 = vsel %vm386, %v369, 0
        %v421 = vsel %vm386, %v370, 0
        %v424 = vsel %vm386, %v371, 0
        %v427 = vsel %vm386, %v372, 0
        %v430 = vsel %vm386, %v373, 0
        %v433 = vsel %vm386, %v374, 0
        %vm435 = vcmask 1043456
        %v437 = vsel %vm435, %v378, 0
        %439 = vmatprep.subr.mxu0 0.0
        %440 = vmatpush1.msra.mxu0 %v375
        %441 = vmatprep.subr.mxu0 0.0
        %442 = vmatpush1.msra.mxu0 %v376
        %443 = vmatprep.subr.mxu0 0.0
        %444 = vmatpush1.msra.mxu0 %v377
        %445 = vmatprep.subr.mxu0 0.0
        %446 = vmatpush1.msra.mxu0 %v437
        %447 = vmatprep.subr.mxu0 0.0
        %448 = vmatpush1.msra.mxu0 0.0
        %449 = vmatprep.subr.mxu0 0.0
        %450 = vmatpush1.msra.mxu0 0.0
        %451 = vmatprep.subr.mxu0 0.0
        %452 = vmatpush1.msra.mxu0 0.0
        %453 = vmatprep.subr.mxu0 0.0
        %454 = vmatpush1.msra.mxu0 0.0
        %455 = vmatprep.subr.mxu0 0.0
        %456 = vmatpush1.msra.mxu0 0.0
        %457 = vmatprep.subr.mxu0 0.0
        %458 = vmatpush1.msra.mxu0 0.0
        %459 = vmatprep.subr.mxu0 0.0
        %460 = vmatpush1.msra.mxu0 0.0
        %461 = vmatprep.subr.mxu0 0.0
        %462 = vmatpush1.msra.mxu0 0.0
        %463 = vmatprep.subr.mxu0 0.0
        %464 = vmatpush1.msra.mxu0 0.0
        %465 = vmatprep.subr.mxu0 0.0
        %466 = vmatpush1.msra.mxu0 0.0
        %467 = vmatprep.subr.mxu0 0.0
        %468 = vmatpush1.msra.mxu0 0.0
        %469 = vmatprep.subr.mxu0 0.0
        %470 = vmatpush1.msra.mxu0 0.0
        %471 = vmatprep.subr.mxu0 0.0
        %472 = vmatpush1.msra.mxu0 0.0
        %473 = vmatprep.subr.mxu0 0.0
        %474 = vmatpush1.msra.mxu0 0.0
        %475 = vmatprep.subr.mxu0 0.0
        %476 = vmatpush1.msra.mxu0 0.0
        %477 = vmatprep.subr.mxu0 0.0
        %478 = vmatpush1.msra.mxu0 0.0
        %479 = vmatprep.subr.mxu0 0.0
        %480 = vmatpush1.msra.mxu0 0.0
        %481 = vmatprep.subr.mxu0 0.0
        %482 = vmatpush1.msra.mxu0 0.0
        %483 = vmatprep.subr.mxu0 0.0
        %484 = vmatpush1.msra.mxu0 0.0
        %485 = vmatprep.subr.mxu0 0.0
        %486 = vmatpush1.msra.mxu0 0.0
        %487 = vmatprep.subr.mxu0 0.0
        %488 = vmatpush1.msra.mxu0 0.0
        %489 = vmatprep.subr.mxu0 0.0
        %490 = vmatpush1.msra.mxu0 0.0
        %491 = vmatprep.subr.mxu0 0.0
        %492 = vmatpush1.msra.mxu0 0.0
        %493 = vmatprep.subr.mxu0 0.0
        %494 = vmatpush1.msra.mxu0 0.0
        %495 = vmatprep.subr.mxu0 0.0
        %496 = vmatpush1.msra.mxu0 0.0
        %497 = vmatprep.subr.mxu0 0.0
        %498 = vmatpush1.msra.mxu0 0.0
        %499 = vmatprep.subr.mxu0 0.0
        %500 = vmatpush1.msra.mxu0 0.0
        %501 = vmatprep.subr.mxu0 0.0
        %502 = vmatpush1.msra.mxu0 0.0
        %503 = vmatprep.mubr.f32.mxu0 0.0
        %504 = vmatmul.mubr.f32.gmra.mrb[0].mxu0 %v388
        %v505 = vpop.f32.mrb[0].mxu0
        %v506 = vadd.f32 %v384, %v505
        %v507 = vpop.f32.mrb[0].mxu0
        %508 = vmatprep.mubr.f32.mxu0 0.0
        %509 = vmatmul.mubr.f32.gmra.mrb[0].mxu0 %v391
        %v510 = vpop.f32.mrb[0].mxu0
        %v511 = vadd.f32 %v384, %v510
        %v512 = vpop.f32.mrb[0].mxu0
        %513 = vmatprep.mubr.f32.mxu0 0.0
        %514 = vmatmul.mubr.f32.gmra.mrb[0].mxu0 %v394
        %v515 = vpop.f32.mrb[0].mxu0
        %v516 = vadd.f32 %v384, %v515
        %v517 = vpop.f32.mrb[0].mxu0
        %518 = vmatprep.mubr.f32.mxu0 0.0
        %519 = vmatmul.mubr.f32.gmra.mrb[0].mxu0 %v397
        %v520 = vpop.f32.mrb[0].mxu0
        %v521 = vadd.f32 %v384, %v520
        %v522 = vpop.f32.mrb[0].mxu0
        %523 = vmatprep.mubr.f32.mxu0 0.0
        %524 = vmatmul.mubr.f32.gmra.mrb[0].mxu0 %v400
        %v525 = vpop.f32.mrb[0].mxu0
        %v526 = vadd.f32 %v384, %v525
        %v527 = vpop.f32.mrb[0].mxu0
        %528 = vmatprep.mubr.f32.mxu0 0.0
        %529 = vmatmul.mubr.f32.gmra.mrb[0].mxu0 %v403
        %v530 = vpop.f32.mrb[0].mxu0
        %v531 = vadd.f32 %v384, %v530
        %v532 = vpop.f32.mrb[0].mxu0
        %533 = vmatprep.mubr.f32.mxu0 0.0
        %534 = vmatmul.mubr.f32.gmra.mrb[0].mxu0 %v406
        %v535 = vpop.f32.mrb[0].mxu0
        %v536 = vadd.f32 %v384, %v535
        %v537 = vpop.f32.mrb[0].mxu0
        %538 = vmatprep.mubr.f32.mxu0 0.0
        %539 = vmatmul.mubr.f32.gmra.mrb[0].mxu0 %v409
        %v540 = vpop.f32.mrb[0].mxu0
        %v541 = vadd.f32 %v384, %v540
        %v542 = vpop.f32.mrb[0].mxu0
        %543 = vmatprep.mubr.f32.mxu0 0.0
        %544 = vmatmul.mubr.f32.gmra.mrb[0].mxu0 %v412
        %v545 = vpop.f32.mrb[0].mxu0
        %v546 = vadd.f32 %v384, %v545
        %v547 = vpop.f32.mrb[0].mxu0
        %548 = vmatprep.mubr.f32.mxu0 0.0
        %549 = vmatmul.mubr.f32.gmra.mrb[0].mxu0 %v415
        %v550 = vpop.f32.mrb[0].mxu0
        %v551 = vadd.f32 %v384, %v550
        %v552 = vpop.f32.mrb[0].mxu0
        %553 = vmatprep.mubr.f32.mxu0 0.0
        %554 = vmatmul.mubr.f32.gmra.mrb[0].mxu0 %v418
        %v555 = vpop.f32.mrb[0].mxu0
        %v556 = vadd.f32 %v384, %v555
        %v557 = vpop.f32.mrb[0].mxu0
        %558 = vmatprep.mubr.f32.mxu0 0.0
        %559 = vmatmul.mubr.f32.gmra.mrb[0].mxu0 %v421
        %v560 = vpop.f32.mrb[0].mxu0
        %v561 = vadd.f32 %v384, %v560
        %v562 = vpop.f32.mrb[0].mxu0
        %563 = vmatprep.mubr.f32.mxu0 0.0
        %564 = vmatmul.mubr.f32.gmra.mrb[0].mxu0 %v424
        %v565 = vpop.f32.mrb[0].mxu0
        %v566 = vadd.f32 %v384, %v565
        %v567 = vpop.f32.mrb[0].mxu0
        %568 = vmatprep.mubr.f32.mxu0 0.0
        %569 = vmatmul.mubr.f32.gmra.mrb[0].mxu0 %v427
        %v570 = vpop.f32.mrb[0].mxu0
        %v571 = vadd.f32 %v384, %v570
        %v572 = vpop.f32.mrb[0].mxu0
        %573 = vmatprep.mubr.f32.mxu0 0.0
        %574 = vmatmul.mubr.f32.gmra.mrb[0].mxu0 %v430
        %v575 = vpop.f32.mrb[0].mxu0
        %v576 = vadd.f32 %v384, %v575
        %v577 = vpop.f32.mrb[0].mxu0
        %578 = vmatprep.mubr.f32.mxu0 0.0
        %579 = vmatmul.mubr.f32.gmra.mrb[0].mxu0 %v433
        %v580 = vpop.f32.mrb[0].mxu0
        %v581 = vadd.f32 %v384, %v580
        %v582 = vpop.f32.mrb[0].mxu0
        %583 = vdwg.mxu0
        %v584 = vmax.f32 %v506, 0.0
        %v585 = vmax.f32 %v511, 0.0
        %v586 = vmax.f32 %v516, 0.0
        %v587 = vmax.f32 %v521, 0.0
        %v588 = vmax.f32 %v526, 0.0
        %v589 = vmax.f32 %v531, 0.0
        %v590 = vmax.f32 %v536, 0.0
        %v591 = vmax.f32 %v541, 0.0
        %v592 = vmax.f32 %v546, 0.0
        %v593 = vmax.f32 %v551, 0.0
        %v594 = vmax.f32 %v556, 0.0
        %v595 = vmax.f32 %v561, 0.0
        %v596 = vmax.f32 %v566, 0.0
        %v597 = vmax.f32 %v571, 0.0
        %v598 = vmax.f32 %v576, 0.0
        %v599 = vmax.f32 %v581, 0.0
        %v600 = vpack.c.bf16 %v585, %v584
        %v601 = vpack.c.bf16 %v587, %v586
        %v602 = vpack.c.bf16 %v589, %v588
        %v603 = vpack.c.bf16 %v591, %v590
        %v604 = vpack.c.bf16 %v593, %v592
        %v605 = vpack.c.bf16 %v595, %v594
        %v606 = vpack.c.bf16 %v597, %v596
        %v607 = vpack.c.bf16 %v599, %v598
        %v608 = vld [vmem:[%s3] sm:$0xf]
        %v609 = vld [vmem:[%s3 + $0x4] sm:$0xf]
        %v610 = vld [vmem:[%s3 + $0x8] sm:$0xf]
        %v611 = vld [vmem:[%s3 + $0xc] sm:$0xf]
        %v612 = vld [vmem:[%s3 + $0x10] sm:$0xf]
        %v613 = vld [vmem:[%s3 + $0x14] sm:$0xf]
        %v614 = vld [vmem:[%s3 + $0x18] sm:$0xf]
        %v615 = vld [vmem:[%s3 + $0x1c] sm:$0xf]
        %v616 = vld [vmem:[%s3 + $0x20] sm:$0xf]
        %v617 = vld [vmem:[%s3 + $0x24] sm:$0xf]
        %v618 = vld [vmem:[%s3 + $0x28] sm:$0xf]
        %v619 = vld [vmem:[%s3 + $0x2c] sm:$0xf]
        %v620 = vld [vmem:[%s3 + $0x30] sm:$0xf]
        %v621 = vld [vmem:[%s3 + $0x34] sm:$0xf]
        %v622 = vld [vmem:[%s3 + $0x38] sm:$0xf]
        %v623 = vld [vmem:[%s3 + $0x3c] sm:$0xf]
        %v624 = vld [vmem:[%s4] sm:$0x1]
        %v626 = vlaneseq
        %v627 = vshrl.u32 %v626, 7
        %v628 = vsub.s32 0, %v627
        %v629 = vrot.slane %v624, %v628
        %v647 = vunpack.c.l.b16 %v608
        %v648 = vunpack.c.l.b16 %v609
        %v649 = vunpack.c.l.b16 %v610
        %v650 = vunpack.c.l.b16 %v611
        %v651 = vunpack.c.l.b16 %v612
        %v652 = vunpack.c.l.b16 %v613
        %v653 = vunpack.c.l.b16 %v614
        %v654 = vunpack.c.l.b16 %v615
        %v655 = vunpack.c.l.b16 %v616
        %v656 = vunpack.c.l.b16 %v617
        %v657 = vunpack.c.l.b16 %v618
        %v658 = vunpack.c.l.b16 %v619
        %v659 = vunpack.c.l.b16 %v620
        %v660 = vunpack.c.l.b16 %v621
        %v661 = vunpack.c.l.b16 %v622
        %v662 = vunpack.c.l.b16 %v623
        %v663 = vpack.c.b16 %v648, %v647
        %v664 = vpack.c.b16 %v650, %v649
        %v665 = vpack.c.b16 %v652, %v651
        %v666 = vpack.c.b16 %v654, %v653
        %v667 = vpack.c.b16 %v656, %v655
        %v668 = vpack.c.b16 %v658, %v657
        %v669 = vpack.c.b16 %v660, %v659
        %v670 = vpack.c.b16 %v662, %v661
        %679 = vmatprep.subr.bf16.mxu0 0
        %680 = vmatpush1.bf16.msra.mxu0 %v663
        %681 = vmatprep.subr.bf16.mxu0 0
        %682 = vmatpush1.bf16.msra.mxu0 %v664
        %683 = vmatprep.subr.bf16.mxu0 0
        %684 = vmatpush1.bf16.msra.mxu0 %v665
        %685 = vmatprep.subr.bf16.mxu0 0
        %686 = vmatpush1.bf16.msra.mxu0 %v666
        %687 = vmatprep.subr.bf16.mxu0 0
        %688 = vmatpush1.bf16.msra.mxu0 %v667
        %689 = vmatprep.subr.bf16.mxu0 0
        %690 = vmatpush1.bf16.msra.mxu0 %v668
        %691 = vmatprep.subr.bf16.mxu0 0
        %692 = vmatpush1.bf16.msra.mxu0 %v669
        %693 = vmatprep.subr.bf16.mxu0 0
        %694 = vmatpush1.bf16.msra.mxu0 %v670
        %695 = vmatprep.subr.bf16.mxu0 0
        %696 = vmatpush1.bf16.msra.mxu0 0
        %697 = vmatprep.subr.bf16.mxu0 0
        %698 = vmatpush1.bf16.msra.mxu0 0
        %699 = vmatprep.subr.bf16.mxu0 0
        %700 = vmatpush1.bf16.msra.mxu0 0
        %701 = vmatprep.subr.bf16.mxu0 0
        %702 = vmatpush1.bf16.msra.mxu0 0
        %703 = vmatprep.subr.bf16.mxu0 0
        %704 = vmatpush1.bf16.msra.mxu0 0
        %705 = vmatprep.subr.bf16.mxu0 0
        %706 = vmatpush1.bf16.msra.mxu0 0
        %707 = vmatprep.subr.bf16.mxu0 0
        %708 = vmatpush1.bf16.msra.mxu0 0
        %709 = vmatprep.subr.bf16.mxu0 0
        %710 = vmatpush1.bf16.msra.mxu0 0
        %711 = vmatprep.mubr.bf16.mxu0 0
        %712 = vmatmul.mubr.bf16.gmra.mrb[0].mxu0 %v600
        %v713 = vpop.f32.mrb[0].mxu0
        %v714 = vadd.f32 %v629, %v713
        %v715 = vpop.f32.mrb[0].mxu0
        %v716 = vpop.f32.mrb[0].mxu0
        %v717 = vadd.f32 %v629, %v716
        %v718 = vpop.f32.mrb[0].mxu0
        %719 = vmatprep.mubr.bf16.mxu0 0
        %720 = vmatmul.mubr.bf16.gmra.mrb[0].mxu0 %v601
        %v721 = vpop.f32.mrb[0].mxu0
        %v722 = vadd.f32 %v629, %v721
        %v723 = vpop.f32.mrb[0].mxu0
        %v724 = vpop.f32.mrb[0].mxu0
        %v725 = vadd.f32 %v629, %v724
        %v726 = vpop.f32.mrb[0].mxu0
        %727 = vmatprep.mubr.bf16.mxu0 0
        %728 = vmatmul.mubr.bf16.gmra.mrb[0].mxu0 %v602
        %v729 = vpop.f32.mrb[0].mxu0
        %v730 = vadd.f32 %v629, %v729
        %v731 = vpop.f32.mrb[0].mxu0
        %v732 = vpop.f32.mrb[0].mxu0
        %v733 = vadd.f32 %v629, %v732
        %v734 = vpop.f32.mrb[0].mxu0
        %735 = vmatprep.mubr.bf16.mxu0 0
        %736 = vmatmul.mubr.bf16.gmra.mrb[0].mxu0 %v603
        %v737 = vpop.f32.mrb[0].mxu0
        %v738 = vadd.f32 %v629, %v737
        %v739 = vpop.f32.mrb[0].mxu0
        %v740 = vpop.f32.mrb[0].mxu0
        %v741 = vadd.f32 %v629, %v740
        %v742 = vpop.f32.mrb[0].mxu0
        %743 = vmatprep.mubr.bf16.mxu0 0
        %744 = vmatmul.mubr.bf16.gmra.mrb[0].mxu0 %v604
        %v745 = vpop.f32.mrb[0].mxu0
        %v746 = vadd.f32 %v629, %v745
        %v747 = vpop.f32.mrb[0].mxu0
        %v748 = vpop.f32.mrb[0].mxu0
        %v749 = vadd.f32 %v629, %v748
        %v750 = vpop.f32.mrb[0].mxu0
        %751 = vmatprep.mubr.bf16.mxu0 0
        %752 = vmatmul.mubr.bf16.gmra.mrb[0].mxu0 %v605
        %v753 = vpop.f32.mrb[0].mxu0
        %v754 = vadd.f32 %v629, %v753
        %v755 = vpop.f32.mrb[0].mxu0
        %v756 = vpop.f32.mrb[0].mxu0
        %v757 = vadd.f32 %v629, %v756
        %v758 = vpop.f32.mrb[0].mxu0
        %759 = vmatprep.mubr.bf16.mxu0 0
        %760 = vmatmul.mubr.bf16.gmra.mrb[0].mxu0 %v606
        %v761 = vpop.f32.mrb[0].mxu0
        %v762 = vadd.f32 %v629, %v761
        %v763 = vpop.f32.mrb[0].mxu0
        %v764 = vpop.f32.mrb[0].mxu0
        %v765 = vadd.f32 %v629, %v764
        %v766 = vpop.f32.mrb[0].mxu0
        %767 = vmatprep.mubr.bf16.mxu0 0
        %768 = vmatmul.mubr.bf16.gmra.mrb[0].mxu0 %v607
        %v769 = vpop.f32.mrb[0].mxu0
        %v770 = vadd.f32 %v629, %v769
        %v771 = vpop.f32.mrb[0].mxu0
        %v772 = vpop.f32.mrb[0].mxu0
        %v773 = vadd.f32 %v629, %v772
        %v774 = vpop.f32.mrb[0].mxu0
        %775 = vdwg.mxu0
        %v776 = vmax.f32 %v714, 0.0
        %v777 = vmax.f32 %v717, 0.0
        %v778 = vmax.f32 %v722, 0.0
        %v779 = vmax.f32 %v725, 0.0
        %v780 = vmax.f32 %v730, 0.0
        %v781 = vmax.f32 %v733, 0.0
        %v782 = vmax.f32 %v738, 0.0
        %v783 = vmax.f32 %v741, 0.0
        %v784 = vmax.f32 %v746, 0.0
        %v785 = vmax.f32 %v749, 0.0
        %v786 = vmax.f32 %v754, 0.0
        %v787 = vmax.f32 %v757, 0.0
        %v788 = vmax.f32 %v762, 0.0
        %v789 = vmax.f32 %v765, 0.0
        %v790 = vmax.f32 %v770, 0.0
        %v791 = vmax.f32 %v773, 0.0
        %v792 = vpack.c.bf16 %v777, %v776
        %v793 = vpack.c.bf16 %v779, %v778
        %v794 = vpack.c.bf16 %v781, %v780
        %v795 = vpack.c.bf16 %v783, %v782
        %v796 = vpack.c.bf16 %v785, %v784
        %v797 = vpack.c.bf16 %v787, %v786
        %v798 = vpack.c.bf16 %v789, %v788
        %v799 = vpack.c.bf16 %v791, %v790
        %v800 = vld [vmem:[%s5] sm:$0xf]
        %v801 = vld [vmem:[%s5 + $0x4] sm:$0xf]
        %v802 = vld [vmem:[%s5 + $0x8] sm:$0xf]
        %v803 = vld [vmem:[%s5 + $0xc] sm:$0xf]
        %v804 = vld [vmem:[%s5 + $0x10] sm:$0xf]
        %v805 = vld [vmem:[%s5 + $0x14] sm:$0xf]
        %v806 = vld [vmem:[%s5 + $0x18] sm:$0xf]
        %v807 = vld [vmem:[%s5 + $0x1c] sm:$0xf]
        %v808 = vld [vmem:[%s6] sm:$0x1]
        %v810 = vlaneseq
        %v811 = vshrl.u32 %v810, 7
        %v812 = vsub.s32 0, %v811
        %v813 = vrot.slane %v808, %v812
        %v823 = vunpack.c.l.b16 %v800
        %v824 = vunpack.c.l.b16 %v801
        %v825 = vunpack.c.l.b16 %v802
        %v826 = vunpack.c.l.b16 %v803
        %v827 = vunpack.c.l.b16 %v804
        %v828 = vunpack.c.l.b16 %v805
        %v829 = vunpack.c.l.b16 %v806
        %v830 = vunpack.c.l.b16 %v807
        %v831 = vpack.c.b16 %v824, %v823
        %v832 = vpack.c.b16 %v826, %v825
        %v833 = vpack.c.b16 %v828, %v827
        %v834 = vpack.c.b16 %v830, %v829
        %vm839 = vcmask 523264
        %v841 = vsel %vm839, %v792, 0
        %v844 = vsel %vm839, %v793, 0
        %v847 = vsel %vm839, %v794, 0
        %v850 = vsel %vm839, %v795, 0
        %v853 = vsel %vm839, %v796, 0
        %v856 = vsel %vm839, %v797, 0
        %v859 = vsel %vm839, %v798, 0
        %v862 = vsel %vm839, %v799, 0
        %864 = vmatprep.subr.bf16.mxu0 0
        %865 = vmatpush1.bf16.msra.mxu0 %v831
        %866 = vmatprep.subr.bf16.mxu0 0
        %867 = vmatpush1.bf16.msra.mxu0 %v832
        %868 = vmatprep.subr.bf16.mxu0 0
        %869 = vmatpush1.bf16.msra.mxu0 %v833
        %870 = vmatprep.subr.bf16.mxu0 0
        %871 = vmatpush1.bf16.msra.mxu0 %v834
        %872 = vmatprep.subr.bf16.mxu0 0
        %873 = vmatpush1.bf16.msra.mxu0 0
        %874 = vmatprep.subr.bf16.mxu0 0
        %875 = vmatpush1.bf16.msra.mxu0 0
        %876 = vmatprep.subr.bf16.mxu0 0
        %877 = vmatpush1.bf16.msra.mxu0 0
        %878 = vmatprep.subr.bf16.mxu0 0
        %879 = vmatpush1.bf16.msra.mxu0 0
        %880 = vmatprep.subr.bf16.mxu0 0
        %881 = vmatpush1.bf16.msra.mxu0 0
        %882 = vmatprep.subr.bf16.mxu0 0
        %883 = vmatpush1.bf16.msra.mxu0 0
        %884 = vmatprep.subr.bf16.mxu0 0
        %885 = vmatpush1.bf16.msra.mxu0 0
        %886 = vmatprep.subr.bf16.mxu0 0
        %887 = vmatpush1.bf16.msra.mxu0 0
        %888 = vmatprep.subr.bf16.mxu0 0
        %889 = vmatpush1.bf16.msra.mxu0 0
        %890 = vmatprep.subr.bf16.mxu0 0
        %891 = vmatpush1.bf16.msra.mxu0 0
        %892 = vmatprep.subr.bf16.mxu0 0
        %893 = vmatpush1.bf16.msra.mxu0 0
        %894 = vmatprep.subr.bf16.mxu0 0
        %895 = vmatpush1.bf16.msra.mxu0 0
        %896 = vmatprep.mubr.bf16.mxu0 0
        %897 = vmatmul.mubr.bf16.gmra.mrb[0].mxu0 %v841
        %v898 = vpop.f32.mrb[0].mxu0
        %v899 = vadd.f32 %v813, %v898
        %v900 = vpop.f32.mrb[0].mxu0
        %v901 = vpop.f32.mrb[0].mxu0
        %v902 = vadd.f32 %v813, %v901
        %v903 = vpop.f32.mrb[0].mxu0
        %904 = vmatprep.mubr.bf16.mxu0 0
        %905 = vmatmul.mubr.bf16.gmra.mrb[0].mxu0 %v844
        %v906 = vpop.f32.mrb[0].mxu0
        %v907 = vadd.f32 %v813, %v906
        %v908 = vpop.f32.mrb[0].mxu0
        %v909 = vpop.f32.mrb[0].mxu0
        %v910 = vadd.f32 %v813, %v909
        %v911 = vpop.f32.mrb[0].mxu0
        %912 = vmatprep.mubr.bf16.mxu0 0
        %913 = vmatmul.mubr.bf16.gmra.mrb[0].mxu0 %v847
        %v914 = vpop.f32.mrb[0].mxu0
        %v915 = vadd.f32 %v813, %v914
        %v916 = vpop.f32.mrb[0].mxu0
        %v917 = vpop.f32.mrb[0].mxu0
        %v918 = vadd.f32 %v813, %v917
        %v919 = vpop.f32.mrb[0].mxu0
        %920 = vmatprep.mubr.bf16.mxu0 0
        %921 = vmatmul.mubr.bf16.gmra.mrb[0].mxu0 %v850
        %v922 = vpop.f32.mrb[0].mxu0
        %v923 = vadd.f32 %v813, %v922
        %v924 = vpop.f32.mrb[0].mxu0
        %v925 = vpop.f32.mrb[0].mxu0
        %v926 = vadd.f32 %v813, %v925
        %v927 = vpop.f32.mrb[0].mxu0
        %928 = vmatprep.mubr.bf16.mxu0 0
        %929 = vmatmul.mubr.bf16.gmra.mrb[0].mxu0 %v853
        %v930 = vpop.f32.mrb[0].mxu0
        %v931 = vadd.f32 %v813, %v930
        %v932 = vpop.f32.mrb[0].mxu0
        %v933 = vpop.f32.mrb[0].mxu0
        %v934 = vadd.f32 %v813, %v933
        %v935 = vpop.f32.mrb[0].mxu0
        %936 = vmatprep.mubr.bf16.mxu0 0
        %937 = vmatmul.mubr.bf16.gmra.mrb[0].mxu0 %v856
        %v938 = vpop.f32.mrb[0].mxu0
        %v939 = vadd.f32 %v813, %v938
        %v940 = vpop.f32.mrb[0].mxu0
        %v941 = vpop.f32.mrb[0].mxu0
        %v942 = vadd.f32 %v813, %v941
        %v943 = vpop.f32.mrb[0].mxu0
        %944 = vmatprep.mubr.bf16.mxu0 0
        %945 = vmatmul.mubr.bf16.gmra.mrb[0].mxu0 %v859
        %v946 = vpop.f32.mrb[0].mxu0
        %v947 = vadd.f32 %v813, %v946
        %v948 = vpop.f32.mrb[0].mxu0
        %v949 = vpop.f32.mrb[0].mxu0
        %v950 = vadd.f32 %v813, %v949
        %v951 = vpop.f32.mrb[0].mxu0
        %952 = vmatprep.mubr.bf16.mxu0 0
        %953 = vmatmul.mubr.bf16.gmra.mrb[0].mxu0 %v862
        %v954 = vpop.f32.mrb[0].mxu0
        %v955 = vadd.f32 %v813, %v954
        %v956 = vpop.f32.mrb[0].mxu0
        %v957 = vpop.f32.mrb[0].mxu0
        %v958 = vadd.f32 %v813, %v957
        %v959 = vpop.f32.mrb[0].mxu0
        %960 = vdwg.mxu0
        %v961 = vmax.f32 %v899, 0.0
        %v962 = vmax.f32 %v902, 0.0
        %v963 = vmax.f32 %v907, 0.0
        %v964 = vmax.f32 %v910, 0.0
        %v965 = vmax.f32 %v915, 0.0
        %v966 = vmax.f32 %v918, 0.0
        %v967 = vmax.f32 %v923, 0.0
        %v968 = vmax.f32 %v926, 0.0
        %v969 = vmax.f32 %v931, 0.0
        %v970 = vmax.f32 %v934, 0.0
        %v971 = vmax.f32 %v939, 0.0
        %v972 = vmax.f32 %v942, 0.0
        %v973 = vmax.f32 %v947, 0.0
        %v974 = vmax.f32 %v950, 0.0
        %v975 = vmax.f32 %v955, 0.0
        %v976 = vmax.f32 %v958, 0.0
        %v977 = vpack.c.bf16 %v962, %v961
        %v978 = vpack.c.bf16 %v964, %v963
        %v979 = vpack.c.bf16 %v966, %v965
        %v980 = vpack.c.bf16 %v968, %v967
        %v981 = vpack.c.bf16 %v970, %v969
        %v982 = vpack.c.bf16 %v972, %v971
        %v983 = vpack.c.bf16 %v974, %v973
        %v984 = vpack.c.bf16 %v976, %v975
        %v985 = vld [vmem:[%s7] sm:$0xf]
        %v986 = vld [vmem:[%s7 + $0x4] sm:$0xf]
        %v987 = vld [vmem:[%s7 + $0x8] sm:$0xf]
        %v988 = vld [vmem:[%s7 + $0xc] sm:$0xf]
        %v989 = vld [vmem:[%s8] sm:$0x1]
        %v991 = vlaneseq
        %v992 = vshrl.u32 %v991, 7
        %v993 = vsub.s32 0, %v992
        %v994 = vrot.slane %v989, %v993
        %v1000 = vunpack.c.l.b16 %v985
        %v1001 = vunpack.c.l.b16 %v986
        %v1002 = vunpack.c.l.b16 %v987
        %v1003 = vunpack.c.l.b16 %v988
        %v1004 = vpack.c.b16 %v1001, %v1000
        %v1005 = vpack.c.b16 %v1003, %v1002
        %vm1008 = vcmask 261120
        %v1010 = vsel %vm1008, %v977, 0
        %v1013 = vsel %vm1008, %v978, 0
        %v1016 = vsel %vm1008, %v979, 0
        %v1019 = vsel %vm1008, %v980, 0
        %v1022 = vsel %vm1008, %v981, 0
        %v1025 = vsel %vm1008, %v982, 0
        %v1028 = vsel %vm1008, %v983, 0
        %v1031 = vsel %vm1008, %v984, 0
        %1033 = vmatprep.subr.bf16.mxu0 0
        %1034 = vmatpush1.bf16.msra.mxu0 %v1004
        %1035 = vmatprep.subr.bf16.mxu0 0
        %1036 = vmatpush1.bf16.msra.mxu0 %v1005
        %1037 = vmatprep.subr.bf16.mxu0 0
        %1038 = vmatpush1.bf16.msra.mxu0 0
        %1039 = vmatprep.subr.bf16.mxu0 0
        %1040 = vmatpush1.bf16.msra.mxu0 0
        %1041 = vmatprep.subr.bf16.mxu0 0
        %1042 = vmatpush1.bf16.msra.mxu0 0
        %1043 = vmatprep.subr.bf16.mxu0 0
        %1044 = vmatpush1.bf16.msra.mxu0 0
        %1045 = vmatprep.subr.bf16.mxu0 0
        %1046 = vmatpush1.bf16.msra.mxu0 0
        %1047 = vmatprep.subr.bf16.mxu0 0
        %1048 = vmatpush1.bf16.msra.mxu0 0
        %1049 = vmatprep.subr.bf16.mxu0 0
        %1050 = vmatpush1.bf16.msra.mxu0 0
        %1051 = vmatprep.subr.bf16.mxu0 0
        %1052 = vmatpush1.bf16.msra.mxu0 0
        %1053 = vmatprep.subr.bf16.mxu0 0
        %1054 = vmatpush1.bf16.msra.mxu0 0
        %1055 = vmatprep.subr.bf16.mxu0 0
        %1056 = vmatpush1.bf16.msra.mxu0 0
        %1057 = vmatprep.subr.bf16.mxu0 0
        %1058 = vmatpush1.bf16.msra.mxu0 0
        %1059 = vmatprep.subr.bf16.mxu0 0
        %1060 = vmatpush1.bf16.msra.mxu0 0
        %1061 = vmatprep.subr.bf16.mxu0 0
        %1062 = vmatpush1.bf16.msra.mxu0 0
        %1063 = vmatprep.subr.bf16.mxu0 0
        %1064 = vmatpush1.bf16.msra.mxu0 0
        %1065 = vmatprep.mubr.bf16.mxu0 0
        %1066 = vmatmul.mubr.bf16.gmra.mrb[0].mxu0 %v1010
        %v1067 = vpop.f32.mrb[0].mxu0
        %v1068 = vadd.f32 %v994, %v1067
        %v1069 = vpop.f32.mrb[0].mxu0
        %v1070 = vpop.f32.mrb[0].mxu0
        %v1071 = vadd.f32 %v994, %v1070
        %v1072 = vpop.f32.mrb[0].mxu0
        %1073 = vmatprep.mubr.bf16.mxu0 0
        %1074 = vmatmul.mubr.bf16.gmra.mrb[0].mxu0 %v1013
        %v1075 = vpop.f32.mrb[0].mxu0
        %v1076 = vadd.f32 %v994, %v1075
        %v1077 = vpop.f32.mrb[0].mxu0
        %v1078 = vpop.f32.mrb[0].mxu0
        %v1079 = vadd.f32 %v994, %v1078
        %v1080 = vpop.f32.mrb[0].mxu0
        %1081 = vmatprep.mubr.bf16.mxu0 0
        %1082 = vmatmul.mubr.bf16.gmra.mrb[0].mxu0 %v1016
        %v1083 = vpop.f32.mrb[0].mxu0
        %v1084 = vadd.f32 %v994, %v1083
        %v1085 = vpop.f32.mrb[0].mxu0
        %v1086 = vpop.f32.mrb[0].mxu0
        %v1087 = vadd.f32 %v994, %v1086
        %v1088 = vpop.f32.mrb[0].mxu0
        %1089 = vmatprep.mubr.bf16.mxu0 0
        %1090 = vmatmul.mubr.bf16.gmra.mrb[0].mxu0 %v1019
        %v1091 = vpop.f32.mrb[0].mxu0
        %v1092 = vadd.f32 %v994, %v1091
        %v1093 = vpop.f32.mrb[0].mxu0
        %v1094 = vpop.f32.mrb[0].mxu0
        %v1095 = vadd.f32 %v994, %v1094
        %v1096 = vpop.f32.mrb[0].mxu0
        %1097 = vmatprep.mubr.bf16.mxu0 0
        %1098 = vmatmul.mubr.bf16.gmra.mrb[0].mxu0 %v1022
        %v1099 = vpop.f32.mrb[0].mxu0
        %v1100 = vadd.f32 %v994, %v1099
        %v1101 = vpop.f32.mrb[0].mxu0
        %v1102 = vpop.f32.mrb[0].mxu0
        %v1103 = vadd.f32 %v994, %v1102
        %v1104 = vpop.f32.mrb[0].mxu0
        %1105 = vmatprep.mubr.bf16.mxu0 0
        %1106 = vmatmul.mubr.bf16.gmra.mrb[0].mxu0 %v1025
        %v1107 = vpop.f32.mrb[0].mxu0
        %v1108 = vadd.f32 %v994, %v1107
        %v1109 = vpop.f32.mrb[0].mxu0
        %v1110 = vpop.f32.mrb[0].mxu0
        %v1111 = vadd.f32 %v994, %v1110
        %v1112 = vpop.f32.mrb[0].mxu0
        %1113 = vmatprep.mubr.bf16.mxu0 0
        %1114 = vmatmul.mubr.bf16.gmra.mrb[0].mxu0 %v1028
        %v1115 = vpop.f32.mrb[0].mxu0
        %v1116 = vadd.f32 %v994, %v1115
        %v1117 = vpop.f32.mrb[0].mxu0
        %v1118 = vpop.f32.mrb[0].mxu0
        %v1119 = vadd.f32 %v994, %v1118
        %v1120 = vpop.f32.mrb[0].mxu0
        %1121 = vmatprep.mubr.bf16.mxu0 0
        %1122 = vmatmul.mubr.bf16.gmra.mrb[0].mxu0 %v1031
        %v1123 = vpop.f32.mrb[0].mxu0
        %v1124 = vadd.f32 %v994, %v1123
        %v1125 = vpop.f32.mrb[0].mxu0
        %v1126 = vpop.f32.mrb[0].mxu0
        %v1127 = vadd.f32 %v994, %v1126
        %v1128 = vpop.f32.mrb[0].mxu0
        %1129 = vdwg.mxu0
        %1130 = vxpose.xlu0.b32.start [1/16] %v1068, 128
        %1131 = vxpose.xlu0.b32.cont [2/16] %v1071, 128
        %1132 = vxpose.xlu0.b32.cont [3/16] %v1076, 128
        %1133 = vxpose.xlu0.b32.cont [4/16] %v1079, 128
        %1134 = vxpose.xlu0.b32.cont [5/16] %v1084, 128
        %1135 = vxpose.xlu0.b32.cont [6/16] %v1087, 128
        %1136 = vxpose.xlu0.b32.cont [7/16] %v1092, 128
        %1137 = vxpose.xlu0.b32.cont [8/16] %v1095, 128
        %1138 = vxpose.xlu0.b32.cont [9/16] %v1100, 128
        %1139 = vxpose.xlu0.b32.cont [10/16] %v1103, 128
        %1140 = vxpose.xlu0.b32.cont [11/16] %v1108, 128
        %1141 = vxpose.xlu0.b32.cont [12/16] %v1111, 128
        %1142 = vxpose.xlu0.b32.cont [13/16] %v1116, 128
        %1143 = vxpose.xlu0.b32.cont [14/16] %v1119, 128
        %1144 = vxpose.xlu0.b32.cont [15/16] %v1124, 128
        %1145 = vxpose.xlu0.b32.end [16/16] %v1127, 128
        %v1146 = vpop.trf.xlu0
        %v1147 = vpop.trf.xlu0
        %v1148 = vpop.trf.xlu0
        %v1149 = vpop.trf.xlu0
        %v1150 = vpop.trf.xlu0
        %v1151 = vpop.trf.xlu0
        %v1152 = vpop.trf.xlu0
        %v1153 = vpop.trf.xlu0
        %v1154 = vpop.trf.xlu0
        %v1155 = vpop.trf.xlu0
        %v1156 = vpop.trf.xlu0
        %v1157 = vpop.trf.xlu0
        %v1158 = vpop.trf.xlu0
        %v1159 = vpop.trf.xlu0
        %v1160 = vpop.trf.xlu0
        %v1161 = vpop.trf.xlu0
        %1162 = vst [vmem:[%s338] sm:$0x3] %v1146
        %s1163 = scalar_lea.vmem %s347, 128
        %v1164 = vld [vmem:[%s1163] sm:$0xff]
        %v1165 = vld [vmem:[%s1163 + $0x8] sm:$0xff]
        %v1166 = vld [vmem:[%s1163 + $0x10] sm:$0xff]
        %v1167 = vld [vmem:[%s1163 + $0x18] sm:$0xff]
        %v1168 = vld [vmem:[%s1163 + $0x20] sm:$0xff]
        %v1169 = vld [vmem:[%s1163 + $0x28] sm:$0xff]
        %v1170 = vld [vmem:[%s1163 + $0x30] sm:$0xff]
        %v1171 = vld [vmem:[%s1163 + $0x38] sm:$0xff]
        %v1172 = vld [vmem:[%s1163 + $0x40] sm:$0xff]
        %v1173 = vld [vmem:[%s1163 + $0x48] sm:$0xff]
        %v1174 = vld [vmem:[%s1163 + $0x50] sm:$0xff]
        %v1175 = vld [vmem:[%s1163 + $0x58] sm:$0xff]
        %v1176 = vld [vmem:[%s1163 + $0x60] sm:$0xff]
        %v1177 = vld [vmem:[%s1163 + $0x68] sm:$0xff]
        %v1178 = vld [vmem:[%s1163 + $0x70] sm:$0xff]
        %v1179 = vld [vmem:[%s1163 + $0x78] sm:$0xff]
        %v1180 = vld [vmem:[%s1] sm:$0xff]
        %v1181 = vld [vmem:[%s1 + $0x8] sm:$0xff]
        %v1182 = vld [vmem:[%s1 + $0x10] sm:$0xff]
        %v1183 = vld [vmem:[%s1 + $0x18] sm:$0xf]
        %v1184 = vld [vmem:[%s2] sm:$0x1]
        %v1186 = vlaneseq
        %v1187 = vshrl.u32 %v1186, 7
        %v1188 = vsub.s32 0, %v1187
        %v1189 = vrot.slane %v1184, %v1188
        %v1192 = vsel %vm386, %v1164, 0
        %v1195 = vsel %vm386, %v1165, 0
        %v1198 = vsel %vm386, %v1166, 0
        %v1201 = vsel %vm386, %v1167, 0
        %v1204 = vsel %vm386, %v1168, 0
        %v1207 = vsel %vm386, %v1169, 0
        %v1210 = vsel %vm386, %v1170, 0
        %v1213 = vsel %vm386, %v1171, 0
        %v1216 = vsel %vm386, %v1172, 0
        %v1219 = vsel %vm386, %v1173, 0
        %v1222 = vsel %vm386, %v1174, 0
        %v1225 = vsel %vm386, %v1175, 0
        %v1228 = vsel %vm386, %v1176, 0
        %v1231 = vsel %vm386, %v1177, 0
        %v1234 = vsel %vm386, %v1178, 0
        %v1237 = vsel %vm386, %v1179, 0
        %v1240 = vsel %vm435, %v1183, 0
        %1242 = vmatprep.subr.mxu0 0.0
        %1243 = vmatpush1.msra.mxu0 %v1180
        %1244 = vmatprep.subr.mxu0 0.0
        %1245 = vmatpush1.msra.mxu0 %v1181
        %1246 = vmatprep.subr.mxu0 0.0
        %1247 = vmatpush1.msra.mxu0 %v1182
        %1248 = vmatprep.subr.mxu0 0.0
        %1249 = vmatpush1.msra.mxu0 %v1240
        %1250 = vmatprep.subr.mxu0 0.0
        %1251 = vmatpush1.msra.mxu0 0.0
        %1252 = vmatprep.subr.mxu0 0.0
        %1253 = vmatpush1.msra.mxu0 0.0
        %1254 = vmatprep.subr.mxu0 0.0
        %1255 = vmatpush1.msra.mxu0 0.0
        %1256 = vmatprep.subr.mxu0 0.0
        %1257 = vmatpush1.msra.mxu0 0.0
        %1258 = vmatprep.subr.mxu0 0.0
        %1259 = vmatpush1.msra.mxu0 0.0
        %1260 = vmatprep.subr.mxu0 0.0
        %1261 = vmatpush1.msra.mxu0 0.0
        %1262 = vmatprep.subr.mxu0 0.0
        %1263 = vmatpush1.msra.mxu0 0.0
        %1264 = vmatprep.subr.mxu0 0.0
        %1265 = vmatpush1.msra.mxu0 0.0
        %1266 = vmatprep.subr.mxu0 0.0
        %1267 = vmatpush1.msra.mxu0 0.0
        %1268 = vmatprep.subr.mxu0 0.0
        %1269 = vmatpush1.msra.mxu0 0.0
        %1270 = vmatprep.subr.mxu0 0.0
        %1271 = vmatpush1.msra.mxu0 0.0
        %1272 = vmatprep.subr.mxu0 0.0
        %1273 = vmatpush1.msra.mxu0 0.0
        %1274 = vmatprep.subr.mxu0 0.0
        %1275 = vmatpush1.msra.mxu0 0.0
        %1276 = vmatprep.subr.mxu0 0.0
        %1277 = vmatpush1.msra.mxu0 0.0
        %1278 = vmatprep.subr.mxu0 0.0
        %1279 = vmatpush1.msra.mxu0 0.0
        %1280 = vmatprep.subr.mxu0 0.0
        %1281 = vmatpush1.msra.mxu0 0.0
        %1282 = vmatprep.subr.mxu0 0.0
        %1283 = vmatpush1.msra.mxu0 0.0
        %1284 = vmatprep.subr.mxu0 0.0
        %1285 = vmatpush1.msra.mxu0 0.0
        %1286 = vmatprep.subr.mxu0 0.0
        %1287 = vmatpush1.msra.mxu0 0.0
        %1288 = vmatprep.subr.mxu0 0.0
        %1289 = vmatpush1.msra.mxu0 0.0
        %1290 = vmatprep.subr.mxu0 0.0
        %1291 = vmatpush1.msra.mxu0 0.0
        %1292 = vmatprep.subr.mxu0 0.0
        %1293 = vmatpush1.msra.mxu0 0.0
        %1294 = vmatprep.subr.mxu0 0.0
        %1295 = vmatpush1.msra.mxu0 0.0
        %1296 = vmatprep.subr.mxu0 0.0
        %1297 = vmatpush1.msra.mxu0 0.0
        %1298 = vmatprep.subr.mxu0 0.0
        %1299 = vmatpush1.msra.mxu0 0.0
        %1300 = vmatprep.subr.mxu0 0.0
        %1301 = vmatpush1.msra.mxu0 0.0
        %1302 = vmatprep.subr.mxu0 0.0
        %1303 = vmatpush1.msra.mxu0 0.0
        %1304 = vmatprep.subr.mxu0 0.0
        %1305 = vmatpush1.msra.mxu0 0.0
        %1306 = vmatprep.mubr.f32.mxu0 0.0
        %1307 = vmatmul.mubr.f32.gmra.mrb[0].mxu0 %v1192
        %v1308 = vpop.f32.mrb[0].mxu0
        %v1309 = vadd.f32 %v1189, %v1308
        %v1310 = vpop.f32.mrb[0].mxu0
        %1311 = vmatprep.mubr.f32.mxu0 0.0
        %1312 = vmatmul.mubr.f32.gmra.mrb[0].mxu0 %v1195
        %v1313 = vpop.f32.mrb[0].mxu0
        %v1314 = vadd.f32 %v1189, %v1313
        %v1315 = vpop.f32.mrb[0].mxu0
        %1316 = vmatprep.mubr.f32.mxu0 0.0
        %1317 = vmatmul.mubr.f32.gmra.mrb[0].mxu0 %v1198
        %v1318 = vpop.f32.mrb[0].mxu0
        %v1319 = vadd.f32 %v1189, %v1318
        %v1320 = vpop.f32.mrb[0].mxu0
        %1321 = vmatprep.mubr.f32.mxu0 0.0
        %1322 = vmatmul.mubr.f32.gmra.mrb[0].mxu0 %v1201
        %v1323 = vpop.f32.mrb[0].mxu0
        %v1324 = vadd.f32 %v1189, %v1323
        %v1325 = vpop.f32.mrb[0].mxu0
        %1326 = vmatprep.mubr.f32.mxu0 0.0
        %1327 = vmatmul.mubr.f32.gmra.mrb[0].mxu0 %v1204
        %v1328 = vpop.f32.mrb[0].mxu0
        %v1329 = vadd.f32 %v1189, %v1328
        %v1330 = vpop.f32.mrb[0].mxu0
        %1331 = vmatprep.mubr.f32.mxu0 0.0
        %1332 = vmatmul.mubr.f32.gmra.mrb[0].mxu0 %v1207
        %v1333 = vpop.f32.mrb[0].mxu0
        %v1334 = vadd.f32 %v1189, %v1333
        %v1335 = vpop.f32.mrb[0].mxu0
        %1336 = vmatprep.mubr.f32.mxu0 0.0
        %1337 = vmatmul.mubr.f32.gmra.mrb[0].mxu0 %v1210
        %v1338 = vpop.f32.mrb[0].mxu0
        %v1339 = vadd.f32 %v1189, %v1338
        %v1340 = vpop.f32.mrb[0].mxu0
        %1341 = vmatprep.mubr.f32.mxu0 0.0
        %1342 = vmatmul.mubr.f32.gmra.mrb[0].mxu0 %v1213
        %v1343 = vpop.f32.mrb[0].mxu0
        %v1344 = vadd.f32 %v1189, %v1343
        %v1345 = vpop.f32.mrb[0].mxu0
        %1346 = vmatprep.mubr.f32.mxu0 0.0
        %1347 = vmatmul.mubr.f32.gmra.mrb[0].mxu0 %v1216
        %v1348 = vpop.f32.mrb[0].mxu0
        %v1349 = vadd.f32 %v1189, %v1348
        %v1350 = vpop.f32.mrb[0].mxu0
        %1351 = vmatprep.mubr.f32.mxu0 0.0
        %1352 = vmatmul.mubr.f32.gmra.mrb[0].mxu0 %v1219
        %v1353 = vpop.f32.mrb[0].mxu0
        %v1354 = vadd.f32 %v1189, %v1353
        %v1355 = vpop.f32.mrb[0].mxu0
        %1356 = vmatprep.mubr.f32.mxu0 0.0
        %1357 = vmatmul.mubr.f32.gmra.mrb[0].mxu0 %v1222
        %v1358 = vpop.f32.mrb[0].mxu0
        %v1359 = vadd.f32 %v1189, %v1358
        %v1360 = vpop.f32.mrb[0].mxu0
        %1361 = vmatprep.mubr.f32.mxu0 0.0
        %1362 = vmatmul.mubr.f32.gmra.mrb[0].mxu0 %v1225
        %v1363 = vpop.f32.mrb[0].mxu0
        %v1364 = vadd.f32 %v1189, %v1363
        %v1365 = vpop.f32.mrb[0].mxu0
        %1366 = vmatprep.mubr.f32.mxu0 0.0
        %1367 = vmatmul.mubr.f32.gmra.mrb[0].mxu0 %v1228
        %v1368 = vpop.f32.mrb[0].mxu0
        %v1369 = vadd.f32 %v1189, %v1368
        %v1370 = vpop.f32.mrb[0].mxu0
        %1371 = vmatprep.mubr.f32.mxu0 0.0
        %1372 = vmatmul.mubr.f32.gmra.mrb[0].mxu0 %v1231
        %v1373 = vpop.f32.mrb[0].mxu0
        %v1374 = vadd.f32 %v1189, %v1373
        %v1375 = vpop.f32.mrb[0].mxu0
        %1376 = vmatprep.mubr.f32.mxu0 0.0
        %1377 = vmatmul.mubr.f32.gmra.mrb[0].mxu0 %v1234
        %v1378 = vpop.f32.mrb[0].mxu0
        %v1379 = vadd.f32 %v1189, %v1378
        %v1380 = vpop.f32.mrb[0].mxu0
        %1381 = vmatprep.mubr.f32.mxu0 0.0
        %1382 = vmatmul.mubr.f32.gmra.mrb[0].mxu0 %v1237
        %v1383 = vpop.f32.mrb[0].mxu0
        %v1384 = vadd.f32 %v1189, %v1383
        %v1385 = vpop.f32.mrb[0].mxu0
        %1386 = vdwg.mxu0
        %v1387 = vmax.f32 %v1309, 0.0
        %v1388 = vmax.f32 %v1314, 0.0
        %v1389 = vmax.f32 %v1319, 0.0
        %v1390 = vmax.f32 %v1324, 0.0
        %v1391 = vmax.f32 %v1329, 0.0
        %v1392 = vmax.f32 %v1334, 0.0
        %v1393 = vmax.f32 %v1339, 0.0
        %v1394 = vmax.f32 %v1344, 0.0
        %v1395 = vmax.f32 %v1349, 0.0
        %v1396 = vmax.f32 %v1354, 0.0
        %v1397 = vmax.f32 %v1359, 0.0
        %v1398 = vmax.f32 %v1364, 0.0
        %v1399 = vmax.f32 %v1369, 0.0
        %v1400 = vmax.f32 %v1374, 0.0
        %v1401 = vmax.f32 %v1379, 0.0
        %v1402 = vmax.f32 %v1384, 0.0
        %v1403 = vpack.c.bf16 %v1388, %v1387
        %v1404 = vpack.c.bf16 %v1390, %v1389
        %v1405 = vpack.c.bf16 %v1392, %v1391
        %v1406 = vpack.c.bf16 %v1394, %v1393
        %v1407 = vpack.c.bf16 %v1396, %v1395
        %v1408 = vpack.c.bf16 %v1398, %v1397
        %v1409 = vpack.c.bf16 %v1400, %v1399
        %v1410 = vpack.c.bf16 %v1402, %v1401
        %v1411 = vld [vmem:[%s3] sm:$0xf]
        %v1412 = vld [vmem:[%s3 + $0x4] sm:$0xf]
        %v1413 = vld [vmem:[%s3 + $0x8] sm:$0xf]
        %v1414 = vld [vmem:[%s3 + $0xc] sm:$0xf]
        %v1415 = vld [vmem:[%s3 + $0x10] sm:$0xf]
        %v1416 = vld [vmem:[%s3 + $0x14] sm:$0xf]
        %v1417 = vld [vmem:[%s3 + $0x18] sm:$0xf]
        %v1418 = vld [vmem:[%s3 + $0x1c] sm:$0xf]
        %v1419 = vld [vmem:[%s3 + $0x20] sm:$0xf]
        %v1420 = vld [vmem:[%s3 + $0x24] sm:$0xf]
        %v1421 = vld [vmem:[%s3 + $0x28] sm:$0xf]
        %v1422 = vld [vmem:[%s3 + $0x2c] sm:$0xf]
        %v1423 = vld [vmem:[%s3 + $0x30] sm:$0xf]
        %v1424 = vld [vmem:[%s3 + $0x34] sm:$0xf]
        %v1425 = vld [vmem:[%s3 + $0x38] sm:$0xf]
        %v1426 = vld [vmem:[%s3 + $0x3c] sm:$0xf]
        %v1427 = vld [vmem:[%s4] sm:$0x1]
        %v1429 = vlaneseq
        %v1430 = vshrl.u32 %v1429, 7
        %v1431 = vsub.s32 0, %v1430
        %v1432 = vrot.slane %v1427, %v1431
        %v1450 = vunpack.c.l.b16 %v1411
        %v1451 = vunpack.c.l.b16 %v1412
        %v1452 = vunpack.c.l.b16 %v1413
        %v1453 = vunpack.c.l.b16 %v1414
        %v1454 = vunpack.c.l.b16 %v1415
        %v1455 = vunpack.c.l.b16 %v1416
        %v1456 = vunpack.c.l.b16 %v1417
        %v1457 = vunpack.c.l.b16 %v1418
        %v1458 = vunpack.c.l.b16 %v1419
        %v1459 = vunpack.c.l.b16 %v1420
        %v1460 = vunpack.c.l.b16 %v1421
        %v1461 = vunpack.c.l.b16 %v1422
        %v1462 = vunpack.c.l.b16 %v1423
        %v1463 = vunpack.c.l.b16 %v1424
        %v1464 = vunpack.c.l.b16 %v1425
        %v1465 = vunpack.c.l.b16 %v1426
        %v1466 = vpack.c.b16 %v1451, %v1450
        %v1467 = vpack.c.b16 %v1453, %v1452
        %v1468 = vpack.c.b16 %v1455, %v1454
        %v1469 = vpack.c.b16 %v1457, %v1456
        %v1470 = vpack.c.b16 %v1459, %v1458
        %v1471 = vpack.c.b16 %v1461, %v1460
        %v1472 = vpack.c.b16 %v1463, %v1462
        %v1473 = vpack.c.b16 %v1465, %v1464
        %1482 = vmatprep.subr.bf16.mxu0 0
        %1483 = vmatpush1.bf16.msra.mxu0 %v1466
        %1484 = vmatprep.subr.bf16.mxu0 0
        %1485 = vmatpush1.bf16.msra.mxu0 %v1467
        %1486 = vmatprep.subr.bf16.mxu0 0
        %1487 = vmatpush1.bf16.msra.mxu0 %v1468
        %1488 = vmatprep.subr.bf16.mxu0 0
        %1489 = vmatpush1.bf16.msra.mxu0 %v1469
        %1490 = vmatprep.subr.bf16.mxu0 0
        %1491 = vmatpush1.bf16.msra.mxu0 %v1470
        %1492 = vmatprep.subr.bf16.mxu0 0
        %1493 = vmatpush1.bf16.msra.mxu0 %v1471
        %1494 = vmatprep.subr.bf16.mxu0 0
        %1495 = vmatpush1.bf16.msra.mxu0 %v1472
        %1496 = vmatprep.subr.bf16.mxu0 0
        %1497 = vmatpush1.bf16.msra.mxu0 %v1473
        %1498 = vmatprep.subr.bf16.mxu0 0
        %1499 = vmatpush1.bf16.msra.mxu0 0
        %1500 = vmatprep.subr.bf16.mxu0 0
        %1501 = vmatpush1.bf16.msra.mxu0 0
        %1502 = vmatprep.subr.bf16.mxu0 0
        %1503 = vmatpush1.bf16.msra.mxu0 0
        %1504 = vmatprep.subr.bf16.mxu0 0
        %1505 = vmatpush1.bf16.msra.mxu0 0
        %1506 = vmatprep.subr.bf16.mxu0 0
        %1507 = vmatpush1.bf16.msra.mxu0 0
        %1508 = vmatprep.subr.bf16.mxu0 0
        %1509 = vmatpush1.bf16.msra.mxu0 0
        %1510 = vmatprep.subr.bf16.mxu0 0
        %1511 = vmatpush1.bf16.msra.mxu0 0
        %1512 = vmatprep.subr.bf16.mxu0 0
        %1513 = vmatpush1.bf16.msra.mxu0 0
        %1514 = vmatprep.mubr.bf16.mxu0 0
        %1515 = vmatmul.mubr.bf16.gmra.mrb[0].mxu0 %v1403
        %v1516 = vpop.f32.mrb[0].mxu0
        %v1517 = vadd.f32 %v1432, %v1516
        %v1518 = vpop.f32.mrb[0].mxu0
        %v1519 = vpop.f32.mrb[0].mxu0
        %v1520 = vadd.f32 %v1432, %v1519
        %v1521 = vpop.f32.mrb[0].mxu0
        %1522 = vmatprep.mubr.bf16.mxu0 0
        %1523 = vmatmul.mubr.bf16.gmra.mrb[0].mxu0 %v1404
        %v1524 = vpop.f32.mrb[0].mxu0
        %v1525 = vadd.f32 %v1432, %v1524
        %v1526 = vpop.f32.mrb[0].mxu0
        %v1527 = vpop.f32.mrb[0].mxu0
        %v1528 = vadd.f32 %v1432, %v1527
        %v1529 = vpop.f32.mrb[0].mxu0
        %1530 = vmatprep.mubr.bf16.mxu0 0
        %1531 = vmatmul.mubr.bf16.gmra.mrb[0].mxu0 %v1405
        %v1532 = vpop.f32.mrb[0].mxu0
        %v1533 = vadd.f32 %v1432, %v1532
        %v1534 = vpop.f32.mrb[0].mxu0
        %v1535 = vpop.f32.mrb[0].mxu0
        %v1536 = vadd.f32 %v1432, %v1535
        %v1537 = vpop.f32.mrb[0].mxu0
        %1538 = vmatprep.mubr.bf16.mxu0 0
        %1539 = vmatmul.mubr.bf16.gmra.mrb[0].mxu0 %v1406
        %v1540 = vpop.f32.mrb[0].mxu0
        %v1541 = vadd.f32 %v1432, %v1540
        %v1542 = vpop.f32.mrb[0].mxu0
        %v1543 = vpop.f32.mrb[0].mxu0
        %v1544 = vadd.f32 %v1432, %v1543
        %v1545 = vpop.f32.mrb[0].mxu0
        %1546 = vmatprep.mubr.bf16.mxu0 0
        %1547 = vmatmul.mubr.bf16.gmra.mrb[0].mxu0 %v1407
        %v1548 = vpop.f32.mrb[0].mxu0
        %v1549 = vadd.f32 %v1432, %v1548
        %v1550 = vpop.f32.mrb[0].mxu0
        %v1551 = vpop.f32.mrb[0].mxu0
        %v1552 = vadd.f32 %v1432, %v1551
        %v1553 = vpop.f32.mrb[0].mxu0
        %1554 = vmatprep.mubr.bf16.mxu0 0
        %1555 = vmatmul.mubr.bf16.gmra.mrb[0].mxu0 %v1408
        %v1556 = vpop.f32.mrb[0].mxu0
        %v1557 = vadd.f32 %v1432, %v1556
        %v1558 = vpop.f32.mrb[0].mxu0
        %v1559 = vpop.f32.mrb[0].mxu0
        %v1560 = vadd.f32 %v1432, %v1559
        %v1561 = vpop.f32.mrb[0].mxu0
        %1562 = vmatprep.mubr.bf16.mxu0 0
        %1563 = vmatmul.mubr.bf16.gmra.mrb[0].mxu0 %v1409
        %v1564 = vpop.f32.mrb[0].mxu0
        %v1565 = vadd.f32 %v1432, %v1564
        %v1566 = vpop.f32.mrb[0].mxu0
        %v1567 = vpop.f32.mrb[0].mxu0
        %v1568 = vadd.f32 %v1432, %v1567
        %v1569 = vpop.f32.mrb[0].mxu0
        %1570 = vmatprep.mubr.bf16.mxu0 0
        %1571 = vmatmul.mubr.bf16.gmra.mrb[0].mxu0 %v1410
        %v1572 = vpop.f32.mrb[0].mxu0
        %v1573 = vadd.f32 %v1432, %v1572
        %v1574 = vpop.f32.mrb[0].mxu0
        %v1575 = vpop.f32.mrb[0].mxu0
        %v1576 = vadd.f32 %v1432, %v1575
        %v1577 = vpop.f32.mrb[0].mxu0
        %1578 = vdwg.mxu0
        %v1579 = vmax.f32 %v1517, 0.0
        %v1580 = vmax.f32 %v1520, 0.0
        %v1581 = vmax.f32 %v1525, 0.0
        %v1582 = vmax.f32 %v1528, 0.0
        %v1583 = vmax.f32 %v1533, 0.0
        %v1584 = vmax.f32 %v1536, 0.0
        %v1585 = vmax.f32 %v1541, 0.0
        %v1586 = vmax.f32 %v1544, 0.0
        %v1587 = vmax.f32 %v1549, 0.0
        %v1588 = vmax.f32 %v1552, 0.0
        %v1589 = vmax.f32 %v1557, 0.0
        %v1590 = vmax.f32 %v1560, 0.0
        %v1591 = vmax.f32 %v1565, 0.0
        %v1592 = vmax.f32 %v1568, 0.0
        %v1593 = vmax.f32 %v1573, 0.0
        %v1594 = vmax.f32 %v1576, 0.0
        %v1595 = vpack.c.bf16 %v1580, %v1579
        %v1596 = vpack.c.bf16 %v1582, %v1581
        %v1597 = vpack.c.bf16 %v1584, %v1583
        %v1598 = vpack.c.bf16 %v1586, %v1585
        %v1599 = vpack.c.bf16 %v1588, %v1587
        %v1600 = vpack.c.bf16 %v1590, %v1589
        %v1601 = vpack.c.bf16 %v1592, %v1591
        %v1602 = vpack.c.bf16 %v1594, %v1593
        %v1603 = vld [vmem:[%s5] sm:$0xf]
        %v1604 = vld [vmem:[%s5 + $0x4] sm:$0xf]
        %v1605 = vld [vmem:[%s5 + $0x8] sm:$0xf]
        %v1606 = vld [vmem:[%s5 + $0xc] sm:$0xf]
        %v1607 = vld [vmem:[%s5 + $0x10] sm:$0xf]
        %v1608 = vld [vmem:[%s5 + $0x14] sm:$0xf]
        %v1609 = vld [vmem:[%s5 + $0x18] sm:$0xf]
        %v1610 = vld [vmem:[%s5 + $0x1c] sm:$0xf]
        %v1611 = vld [vmem:[%s6] sm:$0x1]
        %v1613 = vlaneseq
        %v1614 = vshrl.u32 %v1613, 7
        %v1615 = vsub.s32 0, %v1614
        %v1616 = vrot.slane %v1611, %v1615
        %v1626 = vunpack.c.l.b16 %v1603
        %v1627 = vunpack.c.l.b16 %v1604
        %v1628 = vunpack.c.l.b16 %v1605
        %v1629 = vunpack.c.l.b16 %v1606
        %v1630 = vunpack.c.l.b16 %v1607
        %v1631 = vunpack.c.l.b16 %v1608
        %v1632 = vunpack.c.l.b16 %v1609
        %v1633 = vunpack.c.l.b16 %v1610
        %v1634 = vpack.c.b16 %v1627, %v1626
        %v1635 = vpack.c.b16 %v1629, %v1628
        %v1636 = vpack.c.b16 %v1631, %v1630
        %v1637 = vpack.c.b16 %v1633, %v1632
        %v1643 = vsel %vm839, %v1595, 0
        %v1646 = vsel %vm839, %v1596, 0
        %v1649 = vsel %vm839, %v1597, 0
        %v1652 = vsel %vm839, %v1598, 0
        %v1655 = vsel %vm839, %v1599, 0
        %v1658 = vsel %vm839, %v1600, 0
        %v1661 = vsel %vm839, %v1601, 0
        %v1664 = vsel %vm839, %v1602, 0
        %1666 = vmatprep.subr.bf16.mxu0 0
        %1667 = vmatpush1.bf16.msra.mxu0 %v1634
        %1668 = vmatprep.subr.bf16.mxu0 0
        %1669 = vmatpush1.bf16.msra.mxu0 %v1635
        %1670 = vmatprep.subr.bf16.mxu0 0
        %1671 = vmatpush1.bf16.msra.mxu0 %v1636
        %1672 = vmatprep.subr.bf16.mxu0 0
        %1673 = vmatpush1.bf16.msra.mxu0 %v1637
        %1674 = vmatprep.subr.bf16.mxu0 0
        %1675 = vmatpush1.bf16.msra.mxu0 0
        %1676 = vmatprep.subr.bf16.mxu0 0
        %1677 = vmatpush1.bf16.msra.mxu0 0
        %1678 = vmatprep.subr.bf16.mxu0 0
        %1679 = vmatpush1.bf16.msra.mxu0 0
        %1680 = vmatprep.subr.bf16.mxu0 0
        %1681 = vmatpush1.bf16.msra.mxu0 0
        %1682 = vmatprep.subr.bf16.mxu0 0
        %1683 = vmatpush1.bf16.msra.mxu0 0
        %1684 = vmatprep.subr.bf16.mxu0 0
        %1685 = vmatpush1.bf16.msra.mxu0 0
        %1686 = vmatprep.subr.bf16.mxu0 0
        %1687 = vmatpush1.bf16.msra.mxu0 0
        %1688 = vmatprep.subr.bf16.mxu0 0
        %1689 = vmatpush1.bf16.msra.mxu0 0
        %1690 = vmatprep.subr.bf16.mxu0 0
        %1691 = vmatpush1.bf16.msra.mxu0 0
        %1692 = vmatprep.subr.bf16.mxu0 0
        %1693 = vmatpush1.bf16.msra.mxu0 0
        %1694 = vmatprep.subr.bf16.mxu0 0
        %1695 = vmatpush1.bf16.msra.mxu0 0
        %1696 = vmatprep.subr.bf16.mxu0 0
        %1697 = vmatpush1.bf16.msra.mxu0 0
        %1698 = vmatprep.mubr.bf16.mxu0 0
        %1699 = vmatmul.mubr.bf16.gmra.mrb[0].mxu0 %v1643
        %v1700 = vpop.f32.mrb[0].mxu0
        %v1701 = vadd.f32 %v1616, %v1700
        %v1702 = vpop.f32.mrb[0].mxu0
        %v1703 = vpop.f32.mrb[0].mxu0
        %v1704 = vadd.f32 %v1616, %v1703
        %v1705 = vpop.f32.mrb[0].mxu0
        %1706 = vmatprep.mubr.bf16.mxu0 0
        %1707 = vmatmul.mubr.bf16.gmra.mrb[0].mxu0 %v1646
        %v1708 = vpop.f32.mrb[0].mxu0
        %v1709 = vadd.f32 %v1616, %v1708
        %v1710 = vpop.f32.mrb[0].mxu0
        %v1711 = vpop.f32.mrb[0].mxu0
        %v1712 = vadd.f32 %v1616, %v1711
        %v1713 = vpop.f32.mrb[0].mxu0
        %1714 = vmatprep.mubr.bf16.mxu0 0
        %1715 = vmatmul.mubr.bf16.gmra.mrb[0].mxu0 %v1649
        %v1716 = vpop.f32.mrb[0].mxu0
        %v1717 = vadd.f32 %v1616, %v1716
        %v1718 = vpop.f32.mrb[0].mxu0
        %v1719 = vpop.f32.mrb[0].mxu0
        %v1720 = vadd.f32 %v1616, %v1719
        %v1721 = vpop.f32.mrb[0].mxu0
        %1722 = vmatprep.mubr.bf16.mxu0 0
        %1723 = vmatmul.mubr.bf16.gmra.mrb[0].mxu0 %v1652
        %v1724 = vpop.f32.mrb[0].mxu0
        %v1725 = vadd.f32 %v1616, %v1724
        %v1726 = vpop.f32.mrb[0].mxu0
        %v1727 = vpop.f32.mrb[0].mxu0
        %v1728 = vadd.f32 %v1616, %v1727
        %v1729 = vpop.f32.mrb[0].mxu0
        %1730 = vmatprep.mubr.bf16.mxu0 0
        %1731 = vmatmul.mubr.bf16.gmra.mrb[0].mxu0 %v1655
        %v1732 = vpop.f32.mrb[0].mxu0
        %v1733 = vadd.f32 %v1616, %v1732
        %v1734 = vpop.f32.mrb[0].mxu0
        %v1735 = vpop.f32.mrb[0].mxu0
        %v1736 = vadd.f32 %v1616, %v1735
        %v1737 = vpop.f32.mrb[0].mxu0
        %1738 = vmatprep.mubr.bf16.mxu0 0
        %1739 = vmatmul.mubr.bf16.gmra.mrb[0].mxu0 %v1658
        %v1740 = vpop.f32.mrb[0].mxu0
        %v1741 = vadd.f32 %v1616, %v1740
        %v1742 = vpop.f32.mrb[0].mxu0
        %v1743 = vpop.f32.mrb[0].mxu0
        %v1744 = vadd.f32 %v1616, %v1743
        %v1745 = vpop.f32.mrb[0].mxu0
        %1746 = vmatprep.mubr.bf16.mxu0 0
        %1747 = vmatmul.mubr.bf16.gmra.mrb[0].mxu0 %v1661
        %v1748 = vpop.f32.mrb[0].mxu0
        %v1749 = vadd.f32 %v1616, %v1748
        %v1750 = vpop.f32.mrb[0].mxu0
        %v1751 = vpop.f32.mrb[0].mxu0
        %v1752 = vadd.f32 %v1616, %v1751
        %v1753 = vpop.f32.mrb[0].mxu0
        %1754 = vmatprep.mubr.bf16.mxu0 0
        %1755 = vmatmul.mubr.bf16.gmra.mrb[0].mxu0 %v1664
        %v1756 = vpop.f32.mrb[0].mxu0
        %v1757 = vadd.f32 %v1616, %v1756
        %v1758 = vpop.f32.mrb[0].mxu0
        %v1759 = vpop.f32.mrb[0].mxu0
        %v1760 = vadd.f32 %v1616, %v1759
        %v1761 = vpop.f32.mrb[0].mxu0
        %1762 = vdwg.mxu0
        %v1763 = vmax.f32 %v1701, 0.0
        %v1764 = vmax.f32 %v1704, 0.0
        %v1765 = vmax.f32 %v1709, 0.0
        %v1766 = vmax.f32 %v1712, 0.0
        %v1767 = vmax.f32 %v1717, 0.0
        %v1768 = vmax.f32 %v1720, 0.0
        %v1769 = vmax.f32 %v1725, 0.0
        %v1770 = vmax.f32 %v1728, 0.0
        %v1771 = vmax.f32 %v1733, 0.0
        %v1772 = vmax.f32 %v1736, 0.0
        %v1773 = vmax.f32 %v1741, 0.0
        %v1774 = vmax.f32 %v1744, 0.0
        %v1775 = vmax.f32 %v1749, 0.0
        %v1776 = vmax.f32 %v1752, 0.0
        %v1777 = vmax.f32 %v1757, 0.0
        %v1778 = vmax.f32 %v1760, 0.0
        %v1779 = vpack.c.bf16 %v1764, %v1763
        %v1780 = vpack.c.bf16 %v1766, %v1765
        %v1781 = vpack.c.bf16 %v1768, %v1767
        %v1782 = vpack.c.bf16 %v1770, %v1769
        %v1783 = vpack.c.bf16 %v1772, %v1771
        %v1784 = vpack.c.bf16 %v1774, %v1773
        %v1785 = vpack.c.bf16 %v1776, %v1775
        %v1786 = vpack.c.bf16 %v1778, %v1777
        %v1787 = vld [vmem:[%s7] sm:$0xf]
        %v1788 = vld [vmem:[%s7 + $0x4] sm:$0xf]
        %v1789 = vld [vmem:[%s7 + $0x8] sm:$0xf]
        %v1790 = vld [vmem:[%s7 + $0xc] sm:$0xf]
        %v1791 = vld [vmem:[%s8] sm:$0x1]
        %v1793 = vlaneseq
        %v1794 = vshrl.u32 %v1793, 7
        %v1795 = vsub.s32 0, %v1794
        %v1796 = vrot.slane %v1791, %v1795
        %v1802 = vunpack.c.l.b16 %v1787
        %v1803 = vunpack.c.l.b16 %v1788
        %v1804 = vunpack.c.l.b16 %v1789
        %v1805 = vunpack.c.l.b16 %v1790
        %v1806 = vpack.c.b16 %v1803, %v1802
        %v1807 = vpack.c.b16 %v1805, %v1804
        %v1811 = vsel %vm1008, %v1779, 0
        %v1814 = vsel %vm1008, %v1780, 0
        %v1817 = vsel %vm1008, %v1781, 0
        %v1820 = vsel %vm1008, %v1782, 0
        %v1823 = vsel %vm1008, %v1783, 0
        %v1826 = vsel %vm1008, %v1784, 0
        %v1829 = vsel %vm1008, %v1785, 0
        %v1832 = vsel %vm1008, %v1786, 0
        %1834 = vmatprep.subr.bf16.mxu0 0
        %1835 = vmatpush1.bf16.msra.mxu0 %v1806
        %1836 = vmatprep.subr.bf16.mxu0 0
        %1837 = vmatpush1.bf16.msra.mxu0 %v1807
        %1838 = vmatprep.subr.bf16.mxu0 0
        %1839 = vmatpush1.bf16.msra.mxu0 0
        %1840 = vmatprep.subr.bf16.mxu0 0
        %1841 = vmatpush1.bf16.msra.mxu0 0
        %1842 = vmatprep.subr.bf16.mxu0 0
        %1843 = vmatpush1.bf16.msra.mxu0 0
        %1844 = vmatprep.subr.bf16.mxu0 0
        %1845 = vmatpush1.bf16.msra.mxu0 0
        %1846 = vmatprep.subr.bf16.mxu0 0
        %1847 = vmatpush1.bf16.msra.mxu0 0
        %1848 = vmatprep.subr.bf16.mxu0 0
        %1849 = vmatpush1.bf16.msra.mxu0 0
        %1850 = vmatprep.subr.bf16.mxu0 0
        %1851 = vmatpush1.bf16.msra.mxu0 0
        %1852 = vmatprep.subr.bf16.mxu0 0
        %1853 = vmatpush1.bf16.msra.mxu0 0
        %1854 = vmatprep.subr.bf16.mxu0 0
        %1855 = vmatpush1.bf16.msra.mxu0 0
        %1856 = vmatprep.subr.bf16.mxu0 0
        %1857 = vmatpush1.bf16.msra.mxu0 0
        %1858 = vmatprep.subr.bf16.mxu0 0
        %1859 = vmatpush1.bf16.msra.mxu0 0
        %1860 = vmatprep.subr.bf16.mxu0 0
        %1861 = vmatpush1.bf16.msra.mxu0 0
        %1862 = vmatprep.subr.bf16.mxu0 0
        %1863 = vmatpush1.bf16.msra.mxu0 0
        %1864 = vmatprep.subr.bf16.mxu0 0
        %1865 = vmatpush1.bf16.msra.mxu0 0
        %1866 = vmatprep.mubr.bf16.mxu0 0
        %1867 = vmatmul.mubr.bf16.gmra.mrb[0].mxu0 %v1811
        %v1868 = vpop.f32.mrb[0].mxu0
        %v1869 = vadd.f32 %v1796, %v1868
        %v1870 = vpop.f32.mrb[0].mxu0
        %v1871 = vpop.f32.mrb[0].mxu0
        %v1872 = vadd.f32 %v1796, %v1871
        %v1873 = vpop.f32.mrb[0].mxu0
        %1874 = vmatprep.mubr.bf16.mxu0 0
        %1875 = vmatmul.mubr.bf16.gmra.mrb[0].mxu0 %v1814
        %v1876 = vpop.f32.mrb[0].mxu0
        %v1877 = vadd.f32 %v1796, %v1876
        %v1878 = vpop.f32.mrb[0].mxu0
        %v1879 = vpop.f32.mrb[0].mxu0
        %v1880 = vadd.f32 %v1796, %v1879
        %v1881 = vpop.f32.mrb[0].mxu0
        %1882 = vmatprep.mubr.bf16.mxu0 0
        %1883 = vmatmul.mubr.bf16.gmra.mrb[0].mxu0 %v1817
        %v1884 = vpop.f32.mrb[0].mxu0
        %v1885 = vadd.f32 %v1796, %v1884
        %v1886 = vpop.f32.mrb[0].mxu0
        %v1887 = vpop.f32.mrb[0].mxu0
        %v1888 = vadd.f32 %v1796, %v1887
        %v1889 = vpop.f32.mrb[0].mxu0
        %1890 = vmatprep.mubr.bf16.mxu0 0
        %1891 = vmatmul.mubr.bf16.gmra.mrb[0].mxu0 %v1820
        %v1892 = vpop.f32.mrb[0].mxu0
        %v1893 = vadd.f32 %v1796, %v1892
        %v1894 = vpop.f32.mrb[0].mxu0
        %v1895 = vpop.f32.mrb[0].mxu0
        %v1896 = vadd.f32 %v1796, %v1895
        %v1897 = vpop.f32.mrb[0].mxu0
        %1898 = vmatprep.mubr.bf16.mxu0 0
        %1899 = vmatmul.mubr.bf16.gmra.mrb[0].mxu0 %v1823
        %v1900 = vpop.f32.mrb[0].mxu0
        %v1901 = vadd.f32 %v1796, %v1900
        %v1902 = vpop.f32.mrb[0].mxu0
        %v1903 = vpop.f32.mrb[0].mxu0
        %v1904 = vadd.f32 %v1796, %v1903
        %v1905 = vpop.f32.mrb[0].mxu0
        %1906 = vmatprep.mubr.bf16.mxu0 0
        %1907 = vmatmul.mubr.bf16.gmra.mrb[0].mxu0 %v1826
        %v1908 = vpop.f32.mrb[0].mxu0
        %v1909 = vadd.f32 %v1796, %v1908
        %v1910 = vpop.f32.mrb[0].mxu0
        %v1911 = vpop.f32.mrb[0].mxu0
        %v1912 = vadd.f32 %v1796, %v1911
        %v1913 = vpop.f32.mrb[0].mxu0
        %1914 = vmatprep.mubr.bf16.mxu0 0
        %1915 = vmatmul.mubr.bf16.gmra.mrb[0].mxu0 %v1829
        %v1916 = vpop.f32.mrb[0].mxu0
        %v1917 = vadd.f32 %v1796, %v1916
        %v1918 = vpop.f32.mrb[0].mxu0
        %v1919 = vpop.f32.mrb[0].mxu0
        %v1920 = vadd.f32 %v1796, %v1919
        %v1921 = vpop.f32.mrb[0].mxu0
        %1922 = vmatprep.mubr.bf16.mxu0 0
        %1923 = vmatmul.mubr.bf16.gmra.mrb[0].mxu0 %v1832
        %v1924 = vpop.f32.mrb[0].mxu0
        %v1925 = vadd.f32 %v1796, %v1924
        %v1926 = vpop.f32.mrb[0].mxu0
        %v1927 = vpop.f32.mrb[0].mxu0
        %v1928 = vadd.f32 %v1796, %v1927
        %v1929 = vpop.f32.mrb[0].mxu0
        %1930 = vdwg.mxu0
        %1931 = vxpose.xlu0.b32.start [1/16] %v1869, 128
        %1932 = vxpose.xlu0.b32.cont [2/16] %v1872, 128
        %1933 = vxpose.xlu0.b32.cont [3/16] %v1877, 128
        %1934 = vxpose.xlu0.b32.cont [4/16] %v1880, 128
        %1935 = vxpose.xlu0.b32.cont [5/16] %v1885, 128
        %1936 = vxpose.xlu0.b32.cont [6/16] %v1888, 128
        %1937 = vxpose.xlu0.b32.cont [7/16] %v1893, 128
        %1938 = vxpose.xlu0.b32.cont [8/16] %v1896, 128
        %1939 = vxpose.xlu0.b32.cont [9/16] %v1901, 128
        %1940 = vxpose.xlu0.b32.cont [10/16] %v1904, 128
        %1941 = vxpose.xlu0.b32.cont [11/16] %v1909, 128
        %1942 = vxpose.xlu0.b32.cont [12/16] %v1912, 128
        %1943 = vxpose.xlu0.b32.cont [13/16] %v1917, 128
        %1944 = vxpose.xlu0.b32.cont [14/16] %v1920, 128
        %1945 = vxpose.xlu0.b32.cont [15/16] %v1925, 128
        %1946 = vxpose.xlu0.b32.end [16/16] %v1928, 128
        %v1947 = vpop.trf.xlu0
        %v1948 = vpop.trf.xlu0
        %v1949 = vpop.trf.xlu0
        %v1950 = vpop.trf.xlu0
        %v1951 = vpop.trf.xlu0
        %v1952 = vpop.trf.xlu0
        %v1953 = vpop.trf.xlu0
        %v1954 = vpop.trf.xlu0
        %v1955 = vpop.trf.xlu0
        %v1956 = vpop.trf.xlu0
        %v1957 = vpop.trf.xlu0
        %v1958 = vpop.trf.xlu0
        %v1959 = vpop.trf.xlu0
        %v1960 = vpop.trf.xlu0
        %v1961 = vpop.trf.xlu0
        %v1962 = vpop.trf.xlu0
        %s1963 = scalar_lea.vmem %s338, 2 [#allocation2]
        %1964 = vst [vmem:[%s1963] sm:$0x3] %v1947
        %s1965 = sand.u32 %s225, 1
        %s1966 = scalar_lea.sflag [#allocation3], %s1965
        %s1967 = sand.u32 %s225, 1
        %s1968 = smul.addr %s1967, 4
        %s1969 = scalar_lea.vmem [#allocation2], %s1968
        // Predicated region
        $region57: #{tpu_custom_call.1} parent=55 // pred_check
          %p1970 = pneg %p235
        $region58: #{tpu_custom_call.1} parent=55 // pred_check_branch
          %1972 = sbr.rel (%p1970) target = $region60
        $region59: #{tpu_custom_call.1} parent=55 // pred_region
          %s1973 = smul.u32 2, %s23
          %s1974 = ssub.s32 3, %s1973
          %p1975 = scmp.lt.s32.totalorder %s1974, 2
          %s1976 = scalar_select %p1975, %s1974, 2
          %s1977 = smul.u32 32, %s1976
          %s1979 = ssub.s32 64, %s1977
          %1980 = vsyncadd %s1966, %s1979
          %p1981 = scmp.ne.s32.totalorder 0, %s1977
          %s1982 = smul.addr %s1973, 32
          %s1983 = scalar_lea.hbm %s9, %s1982
          %s1984 = smul.u32 %s1976, 2
          %s1985 = sshll.u32 %s1984, 4
          %s1986 = sshll.u32 %s1969, 4
          %s1987 = int_to_ptr.vmem [resolvable:$true] %s1986
          %1989 = dma.vmem_to_hbm [thread:$0]  (%p1981), %s1987, %s1985, %s1983, %s1966
        $region60: #{tpu_custom_call.1} parent=55 // pred_fallthru
          _
      $region56: #{tpu_custom_call.1} parent=5 // pred_fallthru
        _
      %p1990 = scmp.le.s32.totalorder 2, %s18
      // Predicated region
      $region61: #{tpu_custom_call.1} parent=5 // pred_check
        %p1991 = pneg %p1990
      $region62: #{tpu_custom_call.1} parent=5 // pred_check_branch
        %1993 = sbr.rel (%p1991) target = $region64
      $region63: #{tpu_custom_call.1} parent=5 // pred_region
        %s1994 = ssub.s32 %s18, 2
        // Predicated region
        $region65: #{tpu_custom_call.1} parent=63 // pred_check
          %p1995 = pneg %p241
        $region66: #{tpu_custom_call.1} parent=63 // pred_check_branch
          %1997 = sbr.rel (%p1995) target = $region68
        $region67: #{tpu_custom_call.1} parent=63 // pred_region
          %s1998 = sand.u32 %s226, 1
          %s1999 = scalar_lea.sflag [#allocation3], %s1998
          %s2000 = sand.u32 %s226, 1
          %s2001 = smul.addr %s2000, 4
          %s2002 = scalar_lea.vmem [#allocation2], %s2001
          %2003 = dma.done %s1999, 64
        $region68: #{tpu_custom_call.1} parent=63 // pred_fallthru
          _
      $region64: #{tpu_custom_call.1} parent=5 // pred_fallthru
        _
    $region6: #{tpu_custom_call.1} parent=1 // loop_footer
      %s22 = sadd.s32 1, %s18
    $region7: #{tpu_custom_call.1} parent=1 // loop_footer_branch
      %17 = sbr.rel target = $region3
    $region8: #{tpu_custom_call.1} parent=1 // loop_exit
      _
    %2004 = vsyncpa [#allocation3], 1
    %s2005 = scalar_lea.sflag [#allocation3], 1
    %2006 = vsyncpa %s2005, 1

</llo_original>
